<compile_context>
chip_gen: v7x
topology: tpu7x:2x2x1
jax: 0.10.0
libtpu: 0.0.40
codegen_flags: <defaults>
</compile_context>

<pallas_src>
import functools

import jax
import jax.numpy as jnp
from jax import lax
from jax.experimental import pallas as pl
from jax.experimental.pallas import tpu as pltpu

_MAX_TILE_ROWS = 8192                    # (8192, 128) f32 tile = 4 MiB of logits
_TARGET_TILE_BYTES = 4 * 1024 * 1024     # row-layout fallback tile target (lane-padded)
_APPROX_RECIPROCAL = False               # v7x knob: EUP vrcp (~1e-3 rel err) vs exact divide


def _cdiv(a, b):
    return -(-a // b)


def _round_up(a, b):
    return _cdiv(a, b) * b


@functools.lru_cache(maxsize=None)
def _vmem_limit_bytes():
    """Scoped-VMEM request sized per TPU generation (64 MiB physical on v7x)."""
    cap = 64 * 1024 * 1024
    try:
        cap = int(getattr(pltpu.get_tpu_info(), "vmem_capacity_bytes", cap))
    except Exception:
        pass
    return int(min(64 * 1024 * 1024, max(32 * 1024 * 1024, cap // 2)))


@functools.lru_cache(maxsize=None)
def _num_tensorcores():
    """Best-effort TensorCores-per-chip count (2 on v7x, else 1)."""
    try:
        info = pltpu.get_tpu_info()
        for name in ("num_cores", "core_count", "num_tensorcores", "tensorcores_per_chip"):
            v = getattr(info, name, None)
            if isinstance(v, int) and v == 2:
                return 2
    except Exception:
        pass
    return 1


def _pow(x, p):
    """Static-exponent power (avoids exp/log path for small integer exponents)."""
    pf = float(p)
    if pf == 0.0:
        return jnp.ones_like(x)
    if pf.is_integer() and 1 <= pf <= 8:
        r = x
        for _ in range(int(pf) - 1):
            r = r * x
        return r
    return jnp.power(x, pf)


def _focal_elementwise(x, t, *, alpha, gamma):
    """Elementwise sigmoid focal loss; x: f32 logits, t: f32 one-hot target."""
    ax = jnp.abs(x)
    e = jnp.exp(-ax)
    ope = 1.0 + e
    if _APPROX_RECIPROCAL:
        inv = pl.reciprocal(ope, approx=True)
    else:
        inv = 1.0 / ope
    # pt = (1-p)*t + p*(1-t) without materializing p = sigmoid(x):
    #   pt = e/(1+e) when t matches (x >= 0), else 1/(1+e).
    pt = jnp.where((t > 0.5) == (x >= 0.0), e, 1.0) * inv
    bce = jnp.maximum(x, 0.0) - x * t + jnp.log(ope)
    alpha_w = (1.0 - alpha) + (2.0 * alpha - 1.0) * t
    return bce * alpha_w * _pow(pt, gamma)


def _lane_expand_matrix(c_pad, spl, log2_cpad):
    """(spl, 128) 0/1 matrix: column `lane` selects sample slot lane // c_pad."""
    li = lax.broadcasted_iota(jnp.int32, (spl, 128), 1)
    ri = lax.broadcasted_iota(jnp.int32, (spl, 128), 0)
    return ((li >> log2_cpad) == ri).astype(jnp.float32)


def _expand_lanes(v, expand_mat):
    """Expand a (rows, spl) per-sample stream into per-lane values.

    expand_mat is None when the value is already per-lane (c_pad == 1) or a
    (rows, 1) column that broadcasts at the use site (spl == 1).  Otherwise one
    tiny matmul on the otherwise idle MXU performs the lane expansion."""
    vf = v.astype(jnp.float32)
    if expand_mat is None:
        return vf
    return jnp.dot(vf, expand_mat, preferred_element_type=jnp.float32)


# ---------------------------------------------------------------------------
# Lane-dense kernels (pred flattened to (rows, 128); C_pad divides 128).
# ---------------------------------------------------------------------------
def _focal_lane_sum_kernel(*refs, alpha, gamma, c, c_pad, spl, log2_cpad,
                           n_samples, tr, bpc, w_mode, need_mask):
    if w_mode is None:
        pred_ref, lab_ref, out_ref, acc_ref = refs
        w_ref = None
    else:
        pred_ref, lab_ref, w_ref, out_ref, acc_ref = refs

    i = pl.program_id(1)

    @pl.when(i == 0)
    def _():
        acc_ref[...] = jnp.zeros_like(acc_ref)

    x = pred_ref[...].astype(jnp.float32)                      # (tr, 128)
    lane = lax.broadcasted_iota(jnp.int32, x.shape, 1)
    cls = lane & (c_pad - 1)                                   # class id per lane

    expand = None
    if c_pad > 1 and spl > 1:
        expand = _lane_expand_matrix(c_pad, spl, log2_cpad)
    labx = _expand_lanes(lab_ref[...], expand)                 # label per lane (f32)
    t = (labx == cls.astype(jnp.float32)).astype(jnp.float32)  # in-kernel one-hot

    loss = _focal_elementwise(x, t, alpha=alpha, gamma=gamma)
    if w_mode == "sample":
        loss = loss * _expand_lanes(w_ref[...], expand)
    elif w_mode == "elem":
        loss = loss * w_ref[...].astype(jnp.float32)

    if need_mask:
        # Mask padded classes, padded/ragged samples, and duplicated tail blocks of
        # the per-core split (note: UNclamped linear block id).
        blk = pl.program_id(0) * bpc + i
        row = blk * tr + lax.broadcasted_iota(jnp.int32, x.shape, 0)
        samp = row * spl + (lane >> log2_cpad)
        valid = (samp < n_samples) & (cls < c)
        loss = jnp.where(valid, loss, 0.0)

    acc_ref[...] += jnp.sum(loss, axis=0, keepdims=True)       # (1, 128) accumulator

    @pl.when(i == pl.num_programs(1) - 1)
    def _():
        out_ref[...] = jnp.sum(acc_ref[...], axis=1, keepdims=True).reshape(1, 1, 1)


def _focal_lane_elem_kernel(*refs, alpha, gamma, c_pad, spl, log2_cpad, w_mode):
    if w_mode is None:
        pred_ref, lab_ref, out_ref = refs
        w_ref = None
    else:
        pred_ref, lab_ref, w_ref, out_ref = refs

    x = pred_ref[...].astype(jnp.float32)
    lane = lax.broadcasted_iota(jnp.int32, x.shape, 1)
    cls = lane & (c_pad - 1)

    expand = None
    if c_pad > 1 and spl > 1:
        expand = _lane_expand_matrix(c_pad, spl, log2_cpad)
    labx = _expand_lanes(lab_ref[...], expand)
    t = (labx == cls.astype(jnp.float32)).astype(jnp.float32)

    loss = _focal_elementwise(x, t, alpha=alpha, gamma=gamma)
    if w_mode == "sample":
        loss = loss * _expand_lanes(w_ref[...], expand)
    elif w_mode == "elem":
        loss = loss * w_ref[...].astype(jnp.float32)
    out_ref[...] = loss.astype(out_ref.dtype)


# ---------------------------------------------------------------------------
# Row-layout fallback kernels (C on lanes; used for C > 128).
# ---------------------------------------------------------------------------
def _focal_row_sum_kernel(*refs, alpha, gamma, n_rows, tn, has_weight, need_mask):
    if has_weight:
        pred_ref, lab_ref, w_ref, out_ref, acc_ref = refs
    else:
        pred_ref, lab_ref, out_ref, acc_ref = refs
        w_ref = None

    i = pl.program_id(0)

    @pl.when(i == 0)
    def _():
        acc_ref[...] = jnp.zeros_like(acc_ref)

    x = pred_ref[...].astype(jnp.float32)
    cls = lax.broadcasted_iota(jnp.int32, x.shape, 1)
    t = (lab_ref[...] == cls).astype(jnp.float32)
    loss = _focal_elementwise(x, t, alpha=alpha, gamma=gamma)
    if has_weight:
        loss = loss * w_ref[...].astype(jnp.float32)
    if need_mask:
        rows = i * tn + lax.broadcasted_iota(jnp.int32, x.shape, 0)
        loss = jnp.where(rows < n_rows, loss, 0.0)
    acc_ref[...] += jnp.sum(loss, axis=0, keepdims=True)

    @pl.when(i == pl.num_programs(0) - 1)
    def _():
        out_ref[...] = jnp.sum(acc_ref[...], axis=1, keepdims=True)


def _focal_row_elem_kernel(*refs, alpha, gamma, has_weight):
    if has_weight:
        pred_ref, lab_ref, w_ref, out_ref = refs
    else:
        pred_ref, lab_ref, out_ref = refs
        w_ref = None
    x = pred_ref[...].astype(jnp.float32)
    cls = lax.broadcasted_iota(jnp.int32, x.shape, 1)
    t = (lab_ref[...] == cls).astype(jnp.float32)
    loss = _focal_elementwise(x, t, alpha=alpha, gamma=gamma)
    if has_weight:
        loss = loss * w_ref[...].astype(jnp.float32)
    out_ref[...] = loss.astype(out_ref.dtype)


# ---------------------------------------------------------------------------
# Wrappers.
# ---------------------------------------------------------------------------
def _finish_reduction(total, n, c, reduction, avg_factor):
    if avg_factor is None:
        if reduction == 'mean':
            return total / float(n * c)
        return total                      # 'sum'
    if reduction == 'mean':
        return total / avg_factor
    raise ValueError('avg_factor can not be used with reduction="sum"')


def _lane_dense_path(pred, labels, weight, w_kind, gamma, alpha, reduction, avg_factor):
    n, c = pred.shape
    c_pad = 1 << (c - 1).bit_length() if c > 1 else 1   # next pow2 -> divides 128
    spl = 128 // c_pad                                   # samples per 128-lane row
    log2_cpad = c_pad.bit_length() - 1

    n_pad = _round_up(n, spl)
    if (n_pad != n) or (c_pad != c):
        # We pay a pad-copy anyway; also make the flattened row count 8-aligned.
        n_pad = _round_up(n, spl * 8)
    pad_n, pad_c = n_pad - n, c_pad - c
    rows = (n_pad * c_pad) // 128

    pred_p = pred
    if pad_n or pad_c:
        pred_p = jnp.pad(pred, ((0, pad_n), (0, pad_c)))
    pred_flat = pred_p.reshape(rows, 128)                # contiguous reshape (free)

    lab = labels
    if pad_n:
        lab = jnp.pad(lab, (0, pad_n), constant_values=c)
    lab2 = lab.reshape(rows, spl)

    w_stream = None
    if w_kind == "sample":
        w = weight.astype(jnp.float32)
        if pad_n:
            w = jnp.pad(w, (0, pad_n))
        w_stream = w.reshape(rows, spl)
    elif w_kind == "elem":
        w = weight.astype(jnp.float32)
        if pad_n or pad_c:
            w = jnp.pad(w, ((0, pad_n), (0, pad_c)))
        w_stream = w.reshape(rows, 128)

    tr = rows if rows <= _MAX_TILE_ROWS else _MAX_TILE_ROWS
    nblocks = _cdiv(rows, tr)
    vmem = _vmem_limit_bytes()

    if reduction == 'none':
        in_specs = [pl.BlockSpec((tr, 128), lambda i: (i, 0)),
                    pl.BlockSpec((tr, spl), lambda i: (i, 0))]
        args = [pred_flat, lab2]
        if w_stream is not None:
            wcols = w_stream.shape[1]
            in_specs.append(pl.BlockSpec((tr, wcols), lambda i: (i, 0)))
            args.append(w_stream)
        kernel = functools.partial(
            _focal_lane_elem_kernel, alpha=float(alpha), gamma=float(gamma),
            c_pad=c_pad, spl=spl, log2_cpad=log2_cpad, w_mode=w_kind)
        out = pl.pallas_call(
            kernel,
            out_shape=jax.ShapeDtypeStruct((rows, 128), jnp.float32),
            grid_spec=pltpu.PrefetchScalarGridSpec(
                num_scalar_prefetch=0, grid=(nblocks,),
                in_specs=in_specs,
                out_specs=pl.BlockSpec((tr, 128), lambda i: (i, 0))),
            compiler_params=pltpu.CompilerParams(
                dimension_semantics=("parallel",), vmem_limit_bytes=vmem),
        )(*args)
        out = out.reshape(n_pad, c_pad)
        if pad_n or pad_c:
            out = out[:n, :c]
        return out

    # --- reduced ('mean' / 'sum') path ---
    ncores = min(_num_tensorcores(), nblocks)
    bpc = _cdiv(nblocks, ncores)
    need_mask = (pad_n > 0) or (pad_c > 0) or (rows % tr != 0) or (nblocks % ncores != 0)

    if ncores == 1:
        def blk(ci, i):
            return i
    else:
        def blk(ci, i):
            # Clamp so duplicated tail blocks of the split read a valid block; their
            # contribution is zeroed by the in-kernel (unclamped) sample mask.
            return jnp.minimum(ci * bpc + i, nblocks - 1)

    in_specs = [pl.BlockSpec((tr, 128), lambda ci, i: (blk(ci, i), 0)),
                pl.BlockSpec((tr, spl), lambda ci, i: (blk(ci, i), 0))]
    args = [pred_flat, lab2]
    if w_stream is not None:
        wcols = w_stream.shape[1]
        in_specs.append(pl.BlockSpec((tr, wcols), lambda ci, i: (blk(ci, i), 0)))
        args.append(w_stream)

    kernel = functools.partial(
        _focal_lane_sum_kernel, alpha=float(alpha), gamma=float(gamma), c=c,
        c_pad=c_pad, spl=spl, log2_cpad=log2_cpad, n_samples=n, tr=tr, bpc=bpc,
        w_mode=w_kind, need_mask=need_mask)
    dim_sems = ((pltpu.CORE_PARALLEL, pltpu.ARBITRARY) if ncores > 1
                else ("arbitrary", "arbitrary"))
    partial_sums = pl.pallas_call(
        kernel,
        out_shape=jax.ShapeDtypeStruct((ncores, 1, 1), jnp.float32),
        grid_spec=pltpu.PrefetchScalarGridSpec(
            num_scalar_prefetch=0, grid=(ncores, bpc),
            in_specs=in_specs,
            out_specs=pl.BlockSpec((1, 1, 1), lambda ci, i: (ci, 0, 0)),
            scratch_shapes=[pltpu.VMEM((1, 128), jnp.float32)]),
        compiler_params=pltpu.CompilerParams(
            dimension_semantics=dim_sems, vmem_limit_bytes=vmem),
    )(*args)
    return _finish_reduction(jnp.sum(partial_sums), n, c, reduction, avg_factor)


def _row_path(pred, labels, weight, w_kind, gamma, alpha, reduction, avg_factor):
    n, c = pred.shape
    lab2 = labels.reshape(n, 1)
    bytes_per_row = _round_up(c, 128) * 4         # lane-padded VMEM bytes per sample
    cap = max(8, (_TARGET_TILE_BYTES // bytes_per_row) // 8 * 8)
    tn = n if n <= cap else cap
    nblocks = _cdiv(n, tn)
    vmem = _vmem_limit_bytes()

    w2d = None
    if w_kind == "sample":
        w2d = weight.reshape(n, 1).astype(jnp.float32)
    elif w_kind == "elem":
        w2d = weight.astype(jnp.float32)
    has_weight = w2d is not None

    if reduction == 'none':
        in_specs = [pl.BlockSpec((tn, c), lambda i: (i, 0)),
                    pl.BlockSpec((tn, 1), lambda i: (i, 0))]
        args = [pred, lab2]
        if has_weight:
            in_specs.append(pl.BlockSpec((tn, w2d.shape[1]), lambda i: (i, 0)))
            args.append(w2d)
        kernel = functools.partial(_focal_row_elem_kernel, alpha=float(alpha),
                                   gamma=float(gamma), has_weight=has_weight)
        return pl.pallas_call(
            kernel,
            out_shape=jax.ShapeDtypeStruct((n, c), jnp.float32),
            grid_spec=pltpu.PrefetchScalarGridSpec(
                num_scalar_prefetch=0, grid=(nblocks,),
                in_specs=in_specs,
                out_specs=pl.BlockSpec((tn, c), lambda i: (i, 0))),
            compiler_params=pltpu.CompilerParams(
                dimension_semantics=("parallel",), vmem_limit_bytes=vmem),
        )(*args)

    need_mask = (n % tn != 0)
    in_specs = [pl.BlockSpec((tn, c), lambda i: (i, 0)),
                pl.BlockSpec((tn, 1), lambda i: (i, 0))]
    args = [pred, lab2]
    if has_weight:
        in_specs.append(pl.BlockSpec((tn, w2d.shape[1]), lambda i: (i, 0)))
        args.append(w2d)
    kernel = functools.partial(_focal_row_sum_kernel, alpha=float(alpha),
                               gamma=float(gamma), n_rows=n, tn=tn,
                               has_weight=has_weight, need_mask=need_mask)
    total = pl.pallas_call(
        kernel,
        out_shape=jax.ShapeDtypeStruct((1, 1), jnp.float32),
        grid_spec=pltpu.PrefetchScalarGridSpec(
            num_scalar_prefetch=0, grid=(nblocks,),
            in_specs=in_specs,
            out_specs=pl.BlockSpec((1, 1), lambda i: (0, 0)),
            scratch_shapes=[pltpu.VMEM((1, c), jnp.float32)]),
        compiler_params=pltpu.CompilerParams(
            dimension_semantics=("arbitrary",), vmem_limit_bytes=vmem),
    )(*args)[0, 0]
    return _finish_reduction(total, n, c, reduction, avg_factor)


def sigmoid_focal_loss(pred, target, weight=None, gamma=2.0, alpha=0.25,
                       reduction='mean', avg_factor=None):
    """Mirrors mmdet py_sigmoid_focal_loss + weight_reduce_loss semantics."""
    assert reduction in ('none', 'mean', 'sum')
    pred = jnp.asarray(pred)
    n, c = pred.shape
    labels = jnp.asarray(target).astype(jnp.int32).reshape(n)

    w_kind, w_arr = None, None
    if weight is not None:
        w_arr = jnp.asarray(weight)
        if w_arr.ndim == 1:
            assert w_arr.shape[0] == n
            w_kind = "sample"
        else:
            assert w_arr.shape == (n, c)
            w_kind = "elem"

    # Lane-dense layout pays off when C divides 128 or the power-of-two padding stays
    # small relative to the lane waste of the (tn, C) row layout.
    use_lane_dense = (c <= 64) or (c == 128)
    if use_lane_dense:
        try:
            return _lane_dense_path(pred, labels, w_arr, w_kind, gamma, alpha,
                                    reduction, avg_factor)
        except Exception:
            # TODO(synk): drop this fallback once the small-K MXU label expansion is
            # confirmed to lower on every deployed Mosaic toolchain.
            pass
    return _row_path(pred, labels, w_arr, w_kind, gamma, alpha, reduction, avg_factor)


# ---------------------------------------------------------------------------
# Module-equivalent wrapper.
# ---------------------------------------------------------------------------
class FocalLoss:
    def __init__(self, use_sigmoid=True, gamma=2.0, alpha=0.25,
                 reduction='mean', loss_weight=1.0):
        assert use_sigmoid is True, 'Only sigmoid focal loss supported now.'
        self.use_sigmoid = use_sigmoid
        self.gamma = gamma
        self.alpha = alpha
        self.reduction = reduction
        self.loss_weight = loss_weight

    def __call__(self, pred, target, weight=None, avg_factor=None,
                 reduction_override=None):
        assert reduction_override in (None, 'none', 'mean', 'sum')
        reduction = reduction_override if reduction_override else self.reduction
        loss = sigmoid_focal_loss(pred, target, weight=weight, gamma=self.gamma,
                                  alpha=self.alpha, reduction=reduction,
                                  avg_factor=avg_factor)
        return self.loss_weight * loss


# ---------------------------------------------------------------------------
# Pure-JAX reference mirroring the PyTorch forward.
# ---------------------------------------------------------------------------
def focal_loss_ref(pred, target, weight=None, gamma=2.0, alpha=0.25,
                   reduction='mean', avg_factor=None, loss_weight=1.0):
    num_classes = pred.shape[1]
    x = pred.astype(jnp.float32)
    t = jax.nn.one_hot(target, num_classes + 1, dtype=jnp.float32)[:, :num_classes]
    p = jax.nn.sigmoid(x)
    pt = (1.0 - p) * t + p * (1.0 - t)
    focal_w = (alpha * t + (1.0 - alpha) * (1.0 - t)) * pt ** gamma
    bce = jnp.maximum(x, 0.0) - x * t + jnp.log1p(jnp.exp(-jnp.abs(x)))
    loss = bce * focal_w
    if weight is not None:
        w = weight if weight.ndim == 2 else weight[:, None]
        loss = loss * w
    if avg_factor is None:
        if reduction == 'mean':
            loss = loss.mean()
        elif reduction == 'sum':
            loss = loss.sum()
    else:
        if reduction == 'mean':
            loss = loss.sum() / avg_factor
    return loss_weight * loss


if __name__ == "__main__":
    key = jax.random.PRNGKey(0)
    k1, k2, k3, k4 = jax.random.split(key, 4)

    loss_mod = FocalLoss(use_sigmoid=True, gamma=2.0, alpha=0.25,
                         reduction='mean', loss_weight=1.0)

    # (1) N = 2*16*16 anchors, C = 4 classes; label == C is background; 'mean'.
    N, C = 2 * 16 * 16, 4
    pred = jax.random.normal(k1, (N, C), dtype=jnp.float32) * 2.0
    target = jax.random.randint(k2, (N,), 0, C + 1, dtype=jnp.int32)
    out1 = loss_mod(pred, target)
    ref1 = focal_loss_ref(pred, target)
    assert jnp.allclose(out1, ref1, rtol=1e-4, atol=1e-6), (out1, ref1)

    # (2) multi-row lane tiles + avg_factor.
    N2, C2 = 2048, 8
    pred2 = jax.random.normal(k3, (N2, C2), dtype=jnp.float32)
    target2 = jax.random.randint(k4, (N2,), 0, C2 + 1, dtype=jnp.int32)
    out2 = loss_mod(pred2, target2, avg_factor=123.0)
    ref2 = focal_loss_ref(pred2, target2, avg_factor=123.0)
    assert jnp.allclose(out2, ref2, rtol=1e-4, atol=1e-6), (out2, ref2)

    # (3) ragged N + class padding (C=10 -> 16 lanes) + sample weight + 'sum'.
    N3, C3 = 300, 10
    pred3 = jax.random.normal(k2, (N3, C3), dtype=jnp.float32)
    target3 = jax.random.randint(k1, (N3,), 0, C3 + 1, dtype=jnp.int32)
    w3 = jax.random.uniform(k3, (N3,), dtype=jnp.float32)
    out3 = loss_mod(pred3, target3, weight=w3, reduction_override='sum')
    ref3 = focal_loss_ref(pred3, target3, weight=w3, reduction='sum')
    assert jnp.allclose(out3, ref3, rtol=1e-4, atol=1e-5), (out3, ref3)

    # (4) reduction='none' lane-dense output path.
    out4 = loss_mod(pred, target, reduction_override='none')
    ref4 = focal_loss_ref(pred, target, reduction='none')
    assert jnp.allclose(out4, ref4, rtol=1e-4, atol=1e-6), float(jnp.abs(out4 - ref4).max())

    # (5) element-wise (N, C) weight, 'mean'.
    N5, C5 = 256, 4
    pred5 = jax.random.normal(k4, (N5, C5), dtype=jnp.float32)
    target5 = jax.random.randint(k3, (N5,), 0, C5 + 1, dtype=jnp.int32)
    w5 = jax.random.uniform(k1, (N5, C5), dtype=jnp.float32)
    out5 = loss_mod(pred5, target5, weight=w5)
    ref5 = focal_loss_ref(pred5, target5, weight=w5)
    assert jnp.allclose(out5, ref5, rtol=1e-4, atol=1e-6), (out5, ref5)

    # (6) C > 128 exercises the row-layout fallback kernels ('mean' and 'none').
    N6, C6 = 64, 160
    pred6 = jax.random.normal(k1, (N6, C6), dtype=jnp.float32)
    target6 = jax.random.randint(k2, (N6,), 0, C6 + 1, dtype=jnp.int32)
    out6 = loss_mod(pred6, target6)
    ref6 = focal_loss_ref(pred6, target6)
    assert jnp.allclose(out6, ref6, rtol=1e-4, atol=1e-6), (out6, ref6)
    out6n = loss_mod(pred6, target6, reduction_override='none')
    ref6n = focal_loss_ref(pred6, target6, reduction='none')
    assert jnp.allclose(out6n, ref6n, rtol=1e-4, atol=1e-6), float(jnp.abs(out6n - ref6n).max())

    jax.block_until_ready((out1, out2, out3, out4, out5, out6, out6n))
    print("KERNEL_OK")
</pallas_src>

<mosaic_0001>
module attributes {stable_mosaic.version = 11 : i64} {
  func.func @_focal_lane_sum_kernel(%arg0: i32, %arg1: i32, %arg2: memref<16x128xf32, #tpu.memory_space<vmem>>, %arg3: memref<16x32xi32, #tpu.memory_space<vmem>>, %arg4: memref<1x1x1xf32, #tpu.memory_space<vmem>>, %arg5: memref<1x128xf32, #tpu.memory_space<vmem>>) attributes {dimension_semantics = [#tpu.dimension_semantics<arbitrary>, #tpu.dimension_semantics<arbitrary>], iteration_bounds = array<i64: 1, 1>, scalar_prefetch = 0 : i64, scratch_operands = 1 : i64, tpu.core_type = #tpu.core_type<tc>, window_params = [{transform_indices = @transform_0, window_bounds = array<i64: 16, 128>}, {transform_indices = @transform_1, window_bounds = array<i64: 16, 32>}, {transform_indices = @transform_2, window_bounds = array<i64: 1, 1, 1>}]} {
    %c0_i32 = arith.constant 0 : i32
    %0 = arith.cmpi eq, %arg1, %c0_i32 : i32
    %1 = arith.extui %0 : i1 to i32
    %c0_i32_0 = arith.constant 0 : i32
    %2 = arith.cmpi ne, %1, %c0_i32_0 : i32
    scf.if %2 {
      %cst_21 = arith.constant 0.000000e+00 : f32
      %59 = vector.broadcast %cst_21 : f32 to vector<1x128xf32>
      %c0_22 = arith.constant 0 : index
      %c0_23 = arith.constant 0 : index
      %60 = vector.load %arg5[%c0_22, %c0_23] : memref<1x128xf32, #tpu.memory_space<vmem>>, vector<1x128xf32>
      tpu.vector_store %arg5[%c0_22, %c0_23], %59 {strides = array<i32>} : memref<1x128xf32, #tpu.memory_space<vmem>>, vector<1x128xf32>,
    } else {
    }
    %c0 = arith.constant 0 : index
    %c0_1 = arith.constant 0 : index
    %3 = vector.load %arg2[%c0, %c0_1] : memref<16x128xf32, #tpu.memory_space<vmem>>, vector<16x128xf32>
    %4 = tpu.iota {dimensions = array<i32: 1>} : vector<16x128xi32>
    %c3_i32 = arith.constant 3 : i32
    %5 = vector.broadcast %c3_i32 : i32 to vector<16x128xi32>
    %6 = arith.andi %4, %5 : vector<16x128xi32>
    %7 = tpu.iota {dimensions = array<i32: 1>} : vector<32x128xi32>
    %8 = tpu.iota {dimensions = array<i32: 0>} : vector<32x128xi32>
    %c2_i32 = arith.constant 2 : i32
    %9 = vector.broadcast %c2_i32 : i32 to vector<32x128xi32>
    %10 = arith.shrsi %7, %9 : vector<32x128xi32>
    %11 = arith.cmpi eq, %10, %8 : vector<32x128xi32>
    %12 = arith.extui %11 : vector<32x128xi1> to vector<32x128xi32>
    %13 = arith.sitofp %12 : vector<32x128xi32> to vector<32x128xf32>
    %c0_2 = arith.constant 0 : index
    %c0_3 = arith.constant 0 : index
    %14 = vector.load %arg3[%c0_2, %c0_3] : memref<16x32xi32, #tpu.memory_space<vmem>>, vector<16x32xi32>
    %15 = arith.sitofp %14 : vector<16x32xi32> to vector<16x32xf32>
    %cst = arith.constant dense<0.000000e+00> : vector<16x128xf32>
    %16 = tpu.matmul %15, %13, %cst {dimension_numbers = #tpu.dot_dimension_numbers<[1], [0], [0], [1], [0, 0, 1, 1], [], []>} : vector<16x32xf32>, vector<32x128xf32>, vector<16x128xf32> -> vector<16x128xf32>
    %17 = arith.sitofp %6 : vector<16x128xi32> to vector<16x128xf32>
    %18 = arith.cmpf oeq, %16, %17 : vector<16x128xf32>
    %19 = arith.extui %18 : vector<16x128xi1> to vector<16x128xi32>
    %20 = arith.sitofp %19 : vector<16x128xi32> to vector<16x128xf32>
    %21 = math.absf %3 : vector<16x128xf32>
    %cst_4 = arith.constant 0.000000e+00 : f32
    %22 = vector.broadcast %cst_4 : f32 to vector<16x128xf32>
    %23 = arith.subf %22, %21 : vector<16x128xf32>
    %24 = math.exp %23 : vector<16x128xf32>
    %cst_5 = arith.constant 1.000000e+00 : f32
    %25 = vector.broadcast %cst_5 : f32 to vector<16x128xf32>
    %26 = arith.addf %25, %24 : vector<16x128xf32>
    %cst_6 = arith.constant 1.000000e+00 : f32
    %27 = vector.broadcast %cst_6 : f32 to vector<16x128xf32>
    %28 = arith.divf %27, %26 : vector<16x128xf32>
    %cst_7 = arith.constant 5.000000e-01 : f32
    %29 = vector.broadcast %cst_7 : f32 to vector<16x128xf32>
    %30 = arith.cmpf ogt, %20, %29 : vector<16x128xf32>
    %cst_8 = arith.constant 0.000000e+00 : f32
    %31 = vector.broadcast %cst_8 : f32 to vector<16x128xf32>
    %32 = arith.cmpf oge, %3, %31 : vector<16x128xf32>
    %33 = arith.xori %30, %32 : vector<16x128xi1>
    %cst_9 = arith.constant dense<true> : vector<16x128xi1>
    %34 = arith.xori %33, %cst_9 : vector<16x128xi1>
    %cst_10 = arith.constant 1.000000e+00 : f32
    %35 = vector.broadcast %cst_10 : f32 to vector<16x128xf32>
    %36 = arith.select %34, %24, %35 : vector<16x128xi1>, vector<16x128xf32>
    %37 = arith.mulf %36, %28 : vector<16x128xf32>
    %cst_11 = arith.constant 0.000000e+00 : f32
    %38 = vector.broadcast %cst_11 : f32 to vector<16x128xf32>
    %39 = arith.maximumf %3, %38 : vector<16x128xf32>
    %40 = arith.mulf %3, %20 : vector<16x128xf32>
    %41 = arith.subf %39, %40 : vector<16x128xf32>
    %42 = math.log %26 : vector<16x128xf32>
    %43 = arith.addf %41, %42 : vector<16x128xf32>
    %cst_12 = arith.constant -5.000000e-01 : f32
    %44 = vector.broadcast %cst_12 : f32 to vector<16x128xf32>
    %45 = arith.mulf %44, %20 : vector<16x128xf32>
    %cst_13 = arith.constant 7.500000e-01 : f32
    %46 = vector.broadcast %cst_13 : f32 to vector<16x128xf32>
    %47 = arith.addf %46, %45 : vector<16x128xf32>
    %48 = arith.mulf %43, %47 : vector<16x128xf32>
    %49 = arith.mulf %37, %37 : vector<16x128xf32>
    %50 = arith.mulf %48, %49 : vector<16x128xf32>
    %c0_14 = arith.constant 0 : index
    %c0_15 = arith.constant 0 : index
    %51 = vector.load %arg5[%c0_14, %c0_15] : memref<1x128xf32, #tpu.memory_space<vmem>>, vector<1x128xf32>
    %cst_16 = arith.constant dense<0.000000e+00> : vector<128xf32>
    %52 = vector.multi_reduction <add>, %50, %cst_16 [0] : vector<16x128xf32> to vector<128xf32>
    %53 = vector.shape_cast %52 : vector<128xf32> to vector<1x128xf32>
    %54 = arith.addf %51, %53 : vector<1x128xf32>
    %c0_17 = arith.constant 0 : index
    %c0_18 = arith.constant 0 : index
    %55 = vector.load %arg5[%c0_17, %c0_18] : memref<1x128xf32, #tpu.memory_space<vmem>>, vector<1x128xf32>
    tpu.vector_store %arg5[%c0_17, %c0_18], %54 {strides = array<i32>} : memref<1x128xf32, #tpu.memory_space<vmem>>, vector<1x128xf32>,
    %c0_i32_19 = arith.constant 0 : i32
    %56 = arith.cmpi eq, %arg1, %c0_i32_19 : i32
    %57 = arith.extui %56 : i1 to i32
    %c0_i32_20 = arith.constant 0 : i32
    %58 = arith.cmpi ne, %57, %c0_i32_20 : i32
    scf.if %58 {
      %c0_21 = arith.constant 0 : index
      %c0_22 = arith.constant 0 : index
      %59 = vector.load %arg5[%c0_21, %c0_22] : memref<1x128xf32, #tpu.memory_space<vmem>>, vector<1x128xf32>
      %cst_23 = arith.constant dense<0.000000e+00> : vector<1xf32>
      %60 = vector.multi_reduction <add>, %59, %cst_23 [1] : vector<1x128xf32> to vector<1xf32>
      %61 = vector.shape_cast %60 : vector<1xf32> to vector<1x1xf32>
      %62 = vector.shape_cast %61 : vector<1x1xf32> to vector<1x1x1xf32>
      %c0_24 = arith.constant 0 : index
      %c0_25 = arith.constant 0 : index
      %c0_26 = arith.constant 0 : index
      %63 = vector.load %arg4[%c0_24, %c0_25, %c0_26] : memref<1x1x1xf32, #tpu.memory_space<vmem>>, vector<1x1x1xf32>
      tpu.vector_store %arg4[%c0_24, %c0_25, %c0_26], %62 {strides = array<i32>} : memref<1x1x1xf32, #tpu.memory_space<vmem>>, vector<1x1x1xf32>,
    } else {
    }
    return
  }
  func.func @transform_0(%arg0: i32, %arg1: i32) -> (i32, i32) {
    %c0_i32 = arith.constant 0 : i32
    %c0_i32_0 = arith.constant 0 : i32
    return %arg1, %c0_i32 : i32, i32
  }
  func.func @transform_1(%arg0: i32, %arg1: i32) -> (i32, i32) {
    %c0_i32 = arith.constant 0 : i32
    %c0_i32_0 = arith.constant 0 : i32
    return %arg1, %c0_i32 : i32, i32
  }
  func.func @transform_2(%arg0: i32, %arg1: i32) -> (i32, i32, i32) {
    %c0_i32 = arith.constant 0 : i32
    %c0_i32_0 = arith.constant 0 : i32
    %c0_i32_1 = arith.constant 0 : i32
    return %arg0, %c0_i32, %c0_i32_0 : i32, i32, i32
  }
}

module attributes {stable_mosaic.version = 11 : i64} {
  func.func @_focal_row_sum_kernel(%arg0: i32, %arg1: memref<512x4xf32, #tpu.memory_space<vmem>>, %arg2: memref<512x1xi32, #tpu.memory_space<vmem>>, %arg3: memref<1x1xf32, #tpu.memory_space<vmem>>, %arg4: memref<1x4xf32, #tpu.memory_space<vmem>>) attributes {dimension_semantics = [#tpu.dimension_semantics<arbitrary>], iteration_bounds = array<i64: 1>, scalar_prefetch = 0 : i64, scratch_operands = 1 : i64, tpu.core_type = #tpu.core_type<tc>, window_params = [{transform_indices = @transform_0, window_bounds = array<i64: 512, 4>}, {transform_indices = @transform_1, window_bounds = array<i64: 512, 1>}, {pipeline_mode = #tpu.pipeline_mode<synchronous>, transform_indices = @transform_2, window_bounds = array<i64: 1, 1>}]} {
    %c0_i32 = arith.constant 0 : i32
    %0 = arith.cmpi eq, %arg0, %c0_i32 : i32
    %1 = arith.extui %0 : i1 to i32
    %c0_i32_0 = arith.constant 0 : i32
    %2 = arith.cmpi ne, %1, %c0_i32_0 : i32
    scf.if %2 {
      %cst_20 = arith.constant 0.000000e+00 : f32
      %48 = vector.broadcast %cst_20 : f32 to vector<1x4xf32>
      %c0_21 = arith.constant 0 : index
      %c0_22 = arith.constant 0 : index
      %49 = vector.load %arg4[%c0_21, %c0_22] : memref<1x4xf32, #tpu.memory_space<vmem>>, vector<1x4xf32>
      tpu.vector_store %arg4[%c0_21, %c0_22], %48 {strides = array<i32>} : memref<1x4xf32, #tpu.memory_space<vmem>>, vector<1x4xf32>,
    } else {
    }
    %c0 = arith.constant 0 : index
    %c0_1 = arith.constant 0 : index
    %3 = vector.load %arg1[%c0, %c0_1] : memref<512x4xf32, #tpu.memory_space<vmem>>, vector<512x4xf32>
    %4 = tpu.iota {dimensions = array<i32: 1>} : vector<512x4xi32>
    %c0_2 = arith.constant 0 : index
    %c0_3 = arith.constant 0 : index
    %5 = vector.load %arg2[%c0_2, %c0_3] : memref<512x1xi32, #tpu.memory_space<vmem>>, vector<512x1xi32>
    %6 = vector.broadcast %5 : vector<512x1xi32> to vector<512x4xi32>
    %7 = arith.cmpi eq, %6, %4 : vector<512x4xi32>
    %8 = arith.extui %7 : vector<512x4xi1> to vector<512x4xi32>
    %9 = arith.sitofp %8 : vector<512x4xi32> to vector<512x4xf32>
    %10 = math.absf %3 : vector<512x4xf32>
    %cst = arith.constant 0.000000e+00 : f32
    %11 = vector.broadcast %cst : f32 to vector<512x4xf32>
    %12 = arith.subf %11, %10 : vector<512x4xf32>
    %13 = math.exp %12 : vector<512x4xf32>
    %cst_4 = arith.constant 1.000000e+00 : f32
    %14 = vector.broadcast %cst_4 : f32 to vector<512x4xf32>
    %15 = arith.addf %14, %13 : vector<512x4xf32>
    %cst_5 = arith.constant 1.000000e+00 : f32
    %16 = vector.broadcast %cst_5 : f32 to vector<512x4xf32>
    %17 = arith.divf %16, %15 : vector<512x4xf32>
    %cst_6 = arith.constant 5.000000e-01 : f32
    %18 = vector.broadcast %cst_6 : f32 to vector<512x4xf32>
    %19 = arith.cmpf ogt, %9, %18 : vector<512x4xf32>
    %cst_7 = arith.constant 0.000000e+00 : f32
    %20 = vector.broadcast %cst_7 : f32 to vector<512x4xf32>
    %21 = arith.cmpf oge, %3, %20 : vector<512x4xf32>
    %22 = arith.xori %19, %21 : vector<512x4xi1>
    %cst_8 = arith.constant dense<true> : vector<512x4xi1>
    %23 = arith.xori %22, %cst_8 : vector<512x4xi1>
    %cst_9 = arith.constant 1.000000e+00 : f32
    %24 = vector.broadcast %cst_9 : f32 to vector<512x4xf32>
    %25 = arith.select %23, %13, %24 : vector<512x4xi1>, vector<512x4xf32>
    %26 = arith.mulf %25, %17 : vector<512x4xf32>
    %cst_10 = arith.constant 0.000000e+00 : f32
    %27 = vector.broadcast %cst_10 : f32 to vector<512x4xf32>
    %28 = arith.maximumf %3, %27 : vector<512x4xf32>
    %29 = arith.mulf %3, %9 : vector<512x4xf32>
    %30 = arith.subf %28, %29 : vector<512x4xf32>
    %31 = math.log %15 : vector<512x4xf32>
    %32 = arith.addf %30, %31 : vector<512x4xf32>
    %cst_11 = arith.constant -5.000000e-01 : f32
    %33 = vector.broadcast %cst_11 : f32 to vector<512x4xf32>
    %34 = arith.mulf %33, %9 : vector<512x4xf32>
    %cst_12 = arith.constant 7.500000e-01 : f32
    %35 = vector.broadcast %cst_12 : f32 to vector<512x4xf32>
    %36 = arith.addf %35, %34 : vector<512x4xf32>
    %37 = arith.mulf %32, %36 : vector<512x4xf32>
    %38 = arith.mulf %26, %26 : vector<512x4xf32>
    %39 = arith.mulf %37, %38 : vector<512x4xf32>
    %c0_13 = arith.constant 0 : index
    %c0_14 = arith.constant 0 : index
    %40 = vector.load %arg4[%c0_13, %c0_14] : memref<1x4xf32, #tpu.memory_space<vmem>>, vector<1x4xf32>
    %cst_15 = arith.constant dense<0.000000e+00> : vector<4xf32>
    %41 = vector.multi_reduction <add>, %39, %cst_15 [0] : vector<512x4xf32> to vector<4xf32>
    %42 = vector.shape_cast %41 : vector<4xf32> to vector<1x4xf32>
    %43 = arith.addf %40, %42 : vector<1x4xf32>
    %c0_16 = arith.constant 0 : index
    %c0_17 = arith.constant 0 : index
    %44 = vector.load %arg4[%c0_16, %c0_17] : memref<1x4xf32, #tpu.memory_space<vmem>>, vector<1x4xf32>
    tpu.vector_store %arg4[%c0_16, %c0_17], %43 {strides = array<i32>} : memref<1x4xf32, #tpu.memory_space<vmem>>, vector<1x4xf32>,
    %c0_i32_18 = arith.constant 0 : i32
    %45 = arith.cmpi eq, %arg0, %c0_i32_18 : i32
    %46 = arith.extui %45 : i1 to i32
    %c0_i32_19 = arith.constant 0 : i32
    %47 = arith.cmpi ne, %46, %c0_i32_19 : i32
    scf.if %47 {
      %c0_20 = arith.constant 0 : index
      %c0_21 = arith.constant 0 : index
      %48 = vector.load %arg4[%c0_20, %c0_21] : memref<1x4xf32, #tpu.memory_space<vmem>>, vector<1x4xf32>
      %cst_22 = arith.constant dense<0.000000e+00> : vector<1xf32>
      %49 = vector.multi_reduction <add>, %48, %cst_22 [1] : vector<1x4xf32> to vector<1xf32>
      %50 = vector.shape_cast %49 : vector<1xf32> to vector<1x1xf32>
      %c0_23 = arith.constant 0 : index
      %c0_24 = arith.constant 0 : index
      %51 = vector.load %arg3[%c0_23, %c0_24] : memref<1x1xf32, #tpu.memory_space<vmem>>, vector<1x1xf32>
      tpu.vector_store %arg3[%c0_23, %c0_24], %50 {strides = array<i32>} : memref<1x1xf32, #tpu.memory_space<vmem>>, vector<1x1xf32>,
    } else {
    }
    return
  }
  func.func @transform_0(%arg0: i32) -> (i32, i32) {
    %c0_i32 = arith.constant 0 : i32
    %c0_i32_0 = arith.constant 0 : i32
    return %arg0, %c0_i32 : i32, i32
  }
  func.func @transform_1(%arg0: i32) -> (i32, i32) {
    %c0_i32 = arith.constant 0 : i32
    %c0_i32_0 = arith.constant 0 : i32
    return %arg0, %c0_i32 : i32, i32
  }
  func.func @transform_2(%arg0: i32) -> (i32, i32) {
    %c0_i32 = arith.constant 0 : i32
    %c0_i32_0 = arith.constant 0 : i32
    %c0_i32_1 = arith.constant 0 : i32
    return %c0_i32, %c0_i32_0 : i32, i32
  }
}

</mosaic_0001>

<llo_original>
// kernel: tpu_custom_call.1
$region0: #{tpu_custom_call.1}
  #allocation0 [shape = 'u32[]', space=smem, size = 0x4, offset = 0x4, fixed_abs, tag = 'smem constant byte address 0x4 - core index']
  #allocation1 [shape = 'u32[144,128]{1,0:T(1,128)}', space=vmem, size = 0x12000, scoped, tag = 'internal scratch']
  #allocation2 [shape = 'f32[1,128]{1,0:T(1,128)}', space=vmem, size = 0x200, scoped, tag = 'scratch operand']
  %s0 = inlined_call_operand.hbm [shape: f32[16,128], index: 0, kind: input, shape index: {}]
  %s1 = inlined_call_operand.hbm [shape: s32[16,32], index: 1, kind: input, shape index: {}]
  %s2 = inlined_call_operand.hbm [shape: f32[1,1,1], index: 2, kind: output, shape index: {}]
  %s3 = sld [smem:[#allocation0]]
  $region34: #{tpu_custom_call.1} parent=0
    _
  %s5 = ssub.s32 1, %s3
  %s6 = scalar_select 0, %s5, %s3
  $region1: #{tpu_custom_call.1} parent=0
    #allocation3 [shape = 'u8[8192]{0}', space=vmem, size = 0x2000, scoped, tag = 'input window, operand 0, single buffered']
    #allocation4 [shape = 's32[1]{0}', space=sflag, size = 0x4, scoped, tag = 'scoped memory for tpu_custom_call.1']
    #allocation5 [shape = 's32[1]{0}', space=sflag, size = 0x4, scoped, tag = 'scoped memory for tpu_custom_call.1']
    #allocation6 [shape = 'u8[8192]{0}', space=vmem, size = 0x2000, scoped, tag = 'input window, operand 1, single buffered']
    #allocation7 [shape = 's32[1]{0}', space=sflag, size = 0x4, scoped, tag = 'scoped memory for tpu_custom_call.1']
    #allocation8 [shape = 'u8[512]{0}', space=vmem, size = 0x400, scoped, tag = 'output window, operand 0, single buffered']
    %7 = vsyncpa [#allocation4], 0
    %8 = vsyncpa [#allocation7], 0
    %9 = vsyncpa [#allocation5], 0
    // Predicated region
    $region2: #{tpu_custom_call.1} parent=1 // pred_check
      _
    $region3: #{tpu_custom_call.1} parent=1 // pred_check_branch
      %11 = sbr.rel (0) target = $region5
    $region4: #{tpu_custom_call.1} parent=1 // pred_region
      %s13 = ssub.s32 256, 256
      %14 = vsyncadd [#allocation4], %s13
      %s15 = sshll.u32 [#allocation3], 4
      %s16 = int_to_ptr.vmem [resolvable:$true] %s15
      %21 = dma.hbm_to_vmem [thread:$0]  %s0, 256, %s16, [#allocation4], 128, 128, 8
    $region5: #{tpu_custom_call.1} parent=1 // pred_fallthru
      _
    // Predicated region
    $region6: #{tpu_custom_call.1} parent=1 // pred_check
      _
    $region7: #{tpu_custom_call.1} parent=1 // pred_check_branch
      %23 = sbr.rel (0) target = $region9
    $region8: #{tpu_custom_call.1} parent=1 // pred_region
      %s25 = ssub.s32 256, 256
      %26 = vsyncadd [#allocation7], %s25
      %s27 = sshll.u32 [#allocation6], 4
      %s28 = int_to_ptr.vmem [resolvable:$true] %s27
      %33 = dma.hbm_to_vmem [thread:$0]  %s1, 256, %s28, [#allocation7], 128, 128, 8
    $region9: #{tpu_custom_call.1} parent=1 // pred_fallthru
      _
    // Predicated region
    $region10: #{tpu_custom_call.1} parent=1 // pred_check
      _
    $region11: #{tpu_custom_call.1} parent=1 // pred_check_branch
      %35 = sbr.rel (0) target = $region13
    $region12: #{tpu_custom_call.1} parent=1 // pred_region
      %36 = dma.done [#allocation4], 256
    $region13: #{tpu_custom_call.1} parent=1 // pred_fallthru
      _
    // Predicated region
    $region14: #{tpu_custom_call.1} parent=1 // pred_check
      _
    $region15: #{tpu_custom_call.1} parent=1 // pred_check_branch
      %38 = sbr.rel (0) target = $region17
    $region16: #{tpu_custom_call.1} parent=1 // pred_region
      %39 = dma.done [#allocation7], 256
    $region17: #{tpu_custom_call.1} parent=1 // pred_fallthru
      _
    %p40 = scmp.eq.s32.totalorder 0, 0
    // Predicated region
    $region18: #{tpu_custom_call.1} parent=1 // pred_check
      %p41 = pneg %p40
    $region19: #{tpu_custom_call.1} parent=1 // pred_check_branch
      %43 = sbr.rel (%p41) target = $region21
    $region20: #{tpu_custom_call.1} parent=1 // pred_region
      %44 = vst [vmem:[#allocation2] sm:$0x1] 0.0
    $region21: #{tpu_custom_call.1} parent=1 // pred_fallthru
      _
    %v45 = vld [vmem:[#allocation3] sm:$0xff]
    %v46 = vld [vmem:[#allocation3 + $0x8] sm:$0xff]
    %v47 = vlaneseq
    %v48 = vand.u32 %v47, 127
    %v49 = vand.u32 %v48, 3
    %v50 = vlaneseq
    %v51 = vshrl.u32 %v50, 7
    %v52 = vadd.s32 %v51, 8
    %v53 = vadd.s32 %v51, 16
    %v54 = vadd.s32 %v51, 24
    %v55 = vshra.s32 %v48, 2
    %vm56 = vcmp.eq.s32.totalorder %v55, %v51
    %vm57 = vcmp.eq.s32.totalorder %v55, %v52
    %vm58 = vcmp.eq.s32.totalorder %v55, %v53
    %vm59 = vcmp.eq.s32.totalorder %v55, %v54
    %v60 = vsel %vm56, 1, 0
    %v61 = vsel %vm57, 1, 0
    %v62 = vsel %vm58, 1, 0
    %v63 = vsel %vm59, 1, 0
    %v64 = vcvt.s32.f32 %v60
    %v65 = vcvt.s32.f32 %v61
    %v66 = vcvt.s32.f32 %v62
    %v67 = vcvt.s32.f32 %v63
    %v68 = vld [vmem:[#allocation6] sm:$0xff]
    %v69 = vld [vmem:[#allocation6 + $0x8] sm:$0xff]
    %v70 = vcvt.s32.f32 %v68
    %v71 = vcvt.s32.f32 %v69
    %vm72 = vcmask 261120
    %v74 = vsel %vm72, %v70, 0
    %v77 = vsel %vm72, %v71, 0
    %79 = vmatprep.subr.mxu0 0.0
    %80 = vmatpush1.msra.mxu0 %v64
    %81 = vmatprep.subr.mxu0 0.0
    %82 = vmatpush1.msra.mxu0 %v65
    %83 = vmatprep.subr.mxu0 0.0
    %84 = vmatpush1.msra.mxu0 %v66
    %85 = vmatprep.subr.mxu0 0.0
    %86 = vmatpush1.msra.mxu0 %v67
    %87 = vmatprep.subr.mxu0 0.0
    %88 = vmatpush1.msra.mxu0 0.0
    %89 = vmatprep.subr.mxu0 0.0
    %90 = vmatpush1.msra.mxu0 0.0
    %91 = vmatprep.subr.mxu0 0.0
    %92 = vmatpush1.msra.mxu0 0.0
    %93 = vmatprep.subr.mxu0 0.0
    %94 = vmatpush1.msra.mxu0 0.0
    %95 = vmatprep.subr.mxu0 0.0
    %96 = vmatpush1.msra.mxu0 0.0
    %97 = vmatprep.subr.mxu0 0.0
    %98 = vmatpush1.msra.mxu0 0.0
    %99 = vmatprep.subr.mxu0 0.0
    %100 = vmatpush1.msra.mxu0 0.0
    %101 = vmatprep.subr.mxu0 0.0
    %102 = vmatpush1.msra.mxu0 0.0
    %103 = vmatprep.subr.mxu0 0.0
    %104 = vmatpush1.msra.mxu0 0.0
    %105 = vmatprep.subr.mxu0 0.0
    %106 = vmatpush1.msra.mxu0 0.0
    %107 = vmatprep.subr.mxu0 0.0
    %108 = vmatpush1.msra.mxu0 0.0
    %109 = vmatprep.subr.mxu0 0.0
    %110 = vmatpush1.msra.mxu0 0.0
    %111 = vmatprep.subr.mxu0 0.0
    %112 = vmatpush1.msra.mxu0 0.0
    %113 = vmatprep.subr.mxu0 0.0
    %114 = vmatpush1.msra.mxu0 0.0
    %115 = vmatprep.subr.mxu0 0.0
    %116 = vmatpush1.msra.mxu0 0.0
    %117 = vmatprep.subr.mxu0 0.0
    %118 = vmatpush1.msra.mxu0 0.0
    %119 = vmatprep.subr.mxu0 0.0
    %120 = vmatpush1.msra.mxu0 0.0
    %121 = vmatprep.subr.mxu0 0.0
    %122 = vmatpush1.msra.mxu0 0.0
    %123 = vmatprep.subr.mxu0 0.0
    %124 = vmatpush1.msra.mxu0 0.0
    %125 = vmatprep.subr.mxu0 0.0
    %126 = vmatpush1.msra.mxu0 0.0
    %127 = vmatprep.subr.mxu0 0.0
    %128 = vmatpush1.msra.mxu0 0.0
    %129 = vmatprep.subr.mxu0 0.0
    %130 = vmatpush1.msra.mxu0 0.0
    %131 = vmatprep.subr.mxu0 0.0
    %132 = vmatpush1.msra.mxu0 0.0
    %133 = vmatprep.subr.mxu0 0.0
    %134 = vmatpush1.msra.mxu0 0.0
    %135 = vmatprep.subr.mxu0 0.0
    %136 = vmatpush1.msra.mxu0 0.0
    %137 = vmatprep.subr.mxu0 0.0
    %138 = vmatpush1.msra.mxu0 0.0
    %139 = vmatprep.subr.mxu0 0.0
    %140 = vmatpush1.msra.mxu0 0.0
    %141 = vmatprep.subr.mxu0 0.0
    %142 = vmatpush1.msra.mxu0 0.0
    %143 = vmatprep.mubr.f32.mxu0 0.0
    %144 = vmatmul.mubr.f32.gmra.mrb[0].mxu0 %v74
    %v145 = vpop.f32.mrb[0].mxu0
    %v146 = vadd.f32 0.0, %v145
    %v147 = vpop.f32.mrb[0].mxu0
    %148 = vmatprep.mubr.f32.mxu0 0.0
    %149 = vmatmul.mubr.f32.gmra.mrb[0].mxu0 %v77
    %v150 = vpop.f32.mrb[0].mxu0
    %v151 = vadd.f32 0.0, %v150
    %v152 = vpop.f32.mrb[0].mxu0
    %153 = vdwg.mxu0
    %v154 = vcvt.s32.f32 %v49
    %vm155 = vcmp.eq.f32.partialorder %v146, %v154
    %vm156 = vcmp.eq.f32.partialorder %v151, %v154
    %v157 = vsel %vm155, 1, 0
    %v158 = vsel %vm156, 1, 0
    %v159 = vcvt.s32.f32 %v157
    %v160 = vcvt.s32.f32 %v158
    %v161 = vand.u32 2147483647, %v45
    %v162 = vand.u32 2147483647, %v46
    %v163 = vsub.f32 0.0, %v161
    %v164 = vsub.f32 0.0, %v162
    %v165 = vmul.f32 %v163, 1.442695
    %v166 = vpow.pop %v165
    %v167 = vmul.f32 %v164, 1.442695
    %v168 = vpow.pop %v167
    %v169 = vadd.f32 %v166, 1.0
    %v170 = vadd.f32 %v168, 1.0
    %v171 = vrcp.pop %v169
    %v172 = vmul.f32 1.0, %v171
    %v173 = vrcp.pop %v170
    %v174 = vmul.f32 1.0, %v173
    %vm175 = vcmp.gt.f32.partialorder %v159, 0.5
    %vm176 = vcmp.gt.f32.partialorder %v160, 0.5
    %vm177 = vcmp.ge.f32.partialorder %v45, 0.0
    %vm178 = vcmp.ge.f32.partialorder %v46, 0.0
    %vm179 = vmxor %vm175, %vm177
    %vm180 = vmxor %vm176, %vm178
    %vm181 = vmxor %vm179, 1
    %vm182 = vmxor %vm180, 1
    %v183 = vsel %vm181, %v166, 1.0
    %v184 = vsel %vm182, %v168, 1.0
    %v185 = vmul.f32 %v183, %v172
    %v186 = vmul.f32 %v184, %v174
    %v187 = vmax.f32 %v45, 0.0
    %v188 = vmax.f32 %v46, 0.0
    %v189 = vmul.f32 %v45, %v159
    %v190 = vmul.f32 %v46, %v160
    %v191 = vsub.f32 %v187, %v189
    %v192 = vsub.f32 %v188, %v190
    %v193 = vlog2.pop %v169
    %v194 = vmul.f32 %v193, 0.6931472
    %v195 = vlog2.pop %v170
    %v196 = vmul.f32 %v195, 0.6931472
    %v197 = vadd.f32 %v191, %v194
    %v198 = vadd.f32 %v192, %v196
    %v199 = vmul.f32 %v159, -0.5
    %v200 = vmul.f32 %v160, -0.5
    %v201 = vadd.f32 %v199, 0.75
    %v202 = vadd.f32 %v200, 0.75
    %v203 = vmul.f32 %v197, %v201
    %v204 = vmul.f32 %v198, %v202
    %v205 = vmul.f32 %v185, %v185
    %v206 = vmul.f32 %v186, %v186
    %v207 = vmul.f32 %v203, %v205
    %v208 = vmul.f32 %v204, %v206
    %v209 = vld [vmem:[#allocation2] sm:$0x1]
    %v210 = vadd.f32 %v207, %v208
    %v211 = vrot.slane %v210, 4
    %v212 = vadd.f32 %v210, %v211
    %v213 = vrot.slane %v212, 2
    %v214 = vadd.f32 %v212, %v213
    %v215 = vrot.slane %v214, 1
    %v216 = vadd.f32 %v214, %v215
    %v217 = vadd.f32 %v209, %v216
    %218 = vst [vmem:[#allocation2] sm:$0x1] %v217
    // Predicated region
    $region22: #{tpu_custom_call.1} parent=1 // pred_check
      %p219 = pneg %p40
    $region23: #{tpu_custom_call.1} parent=1 // pred_check_branch
      %221 = sbr.rel (%p219) target = $region25
    $region24: #{tpu_custom_call.1} parent=1 // pred_region
      %v222 = vld [vmem:[#allocation2] sm:$0x1]
      %vm223 = vcmask 1040384
      %v224 = vsel %vm223, %v222, 0.0
      %225 = vadd.xlane.f32.xlu0 %v224
      %v226 = vpop.xlane.xlu0 %225
      %vm227 = vcmask 0
      %228 = vst.msk [vmem:[#allocation8] sm:$0x1] %vm227, %v226
    $region25: #{tpu_custom_call.1} parent=1 // pred_fallthru
      _
    // Predicated region
    $region26: #{tpu_custom_call.1} parent=1 // pred_check
      _
    $region27: #{tpu_custom_call.1} parent=1 // pred_check_branch
      %230 = sbr.rel (0) target = $region29
    $region28: #{tpu_custom_call.1} parent=1 // pred_region
      %s232 = ssub.s32 16, 16
      %233 = vsyncadd [#allocation5], %s232
      %s235 = sshll.u32 [#allocation8], 4
      %s236 = int_to_ptr.vmem [resolvable:$true] %s235
      %238 = dma.vmem_to_hbm [thread:$0]  %s236, 16, %s2, [#allocation5]
    $region29: #{tpu_custom_call.1} parent=1 // pred_fallthru
      _
    // Predicated region
    $region30: #{tpu_custom_call.1} parent=1 // pred_check
      _
    $region31: #{tpu_custom_call.1} parent=1 // pred_check_branch
      %240 = sbr.rel (0) target = $region33
    $region32: #{tpu_custom_call.1} parent=1 // pred_region
      %241 = dma.done [#allocation5], 16
    $region33: #{tpu_custom_call.1} parent=1 // pred_fallthru
      _
    %242 = vsyncpa [#allocation4], 1
    %243 = vsyncpa [#allocation7], 1
    %244 = vsyncpa [#allocation5], 1

// kernel: tpu_custom_call.1
$region0: #{tpu_custom_call.1}
  #allocation0 [shape = 'u32[]', space=smem, size = 0x4, offset = 0x4, fixed_abs, tag = 'smem constant byte address 0x4 - core index']
  #allocation1 [shape = 'u32[144,128]{1,0:T(1,128)}', space=vmem, size = 0x12000, scoped, tag = 'internal scratch']
  #allocation2 [shape = 'f32[1,4]{1,0:T(1,128)}', space=vmem, size = 0x200, scoped, tag = 'scratch operand']
  %s0 = inlined_call_operand.vmem [shape: f32[512,4], index: 0, kind: input, shape index: {}]
  %s1 = inlined_call_operand.vmem [shape: s32[512,1], index: 1, kind: input, shape index: {}]
  %s2 = inlined_call_operand.hbm [shape: f32[1,1], index: 2, kind: output, shape index: {}]
  %s3 = sld [smem:[#allocation0]]
  $region26: #{tpu_custom_call.1} parent=0
    _
  %s5 = ssub.s32 1, %s3
  %s6 = scalar_select 0, %s5, %s3
  $region1: #{tpu_custom_call.1} parent=0
    #allocation3 [shape = 'u8[512]{0}', space=vmem, size = 0x400, scoped, tag = 'output window, operand 0, single buffered']
    #allocation4 [shape = 's32[1]{0}', space=sflag, size = 0x4, scoped, tag = 'scoped memory for tpu_custom_call.1']
    %7 = vsyncpa [#allocation4], 0
    // Predicated region
    $region2: #{tpu_custom_call.1} parent=1 // pred_check
      _
    $region3: #{tpu_custom_call.1} parent=1 // pred_check_branch
      %9 = sbr.rel (0) target = $region5
    $region4: #{tpu_custom_call.1} parent=1 // pred_region
      _
    $region5: #{tpu_custom_call.1} parent=1 // pred_fallthru
      _
    // Predicated region
    $region6: #{tpu_custom_call.1} parent=1 // pred_check
      _
    $region7: #{tpu_custom_call.1} parent=1 // pred_check_branch
      %11 = sbr.rel (0) target = $region9
    $region8: #{tpu_custom_call.1} parent=1 // pred_region
      _
    $region9: #{tpu_custom_call.1} parent=1 // pred_fallthru
      _
    %p12 = scmp.eq.s32.totalorder 0, 0
    // Predicated region
    $region10: #{tpu_custom_call.1} parent=1 // pred_check
      %p13 = pneg %p12
    $region11: #{tpu_custom_call.1} parent=1 // pred_check_branch
      %15 = sbr.rel (%p13) target = $region13
    $region12: #{tpu_custom_call.1} parent=1 // pred_region
      %vm16 = vcmask 24576
      %17 = vst.msk [vmem:[#allocation2] sm:$0x1] %vm16, 0.0
    $region13: #{tpu_custom_call.1} parent=1 // pred_fallthru
      _
    %v18 = vld [vmem:[%s0] sm:$0xff]
    %v19 = vld [vmem:[%s0 + $0x8] sm:$0xff]
    %v20 = vld [vmem:[%s0 + $0x10] sm:$0xff]
    %v21 = vld [vmem:[%s0 + $0x18] sm:$0xff]
    %v22 = vld [vmem:[%s0 + $0x20] sm:$0xff]
    %v23 = vld [vmem:[%s0 + $0x28] sm:$0xff]
    %v24 = vld [vmem:[%s0 + $0x30] sm:$0xff]
    %v25 = vld [vmem:[%s0 + $0x38] sm:$0xff]
    %v26 = vld [vmem:[%s0 + $0x40] sm:$0xff]
    %v27 = vld [vmem:[%s0 + $0x48] sm:$0xff]
    %v28 = vld [vmem:[%s0 + $0x50] sm:$0xff]
    %v29 = vld [vmem:[%s0 + $0x58] sm:$0xff]
    %v30 = vld [vmem:[%s0 + $0x60] sm:$0xff]
    %v31 = vld [vmem:[%s0 + $0x68] sm:$0xff]
    %v32 = vld [vmem:[%s0 + $0x70] sm:$0xff]
    %v33 = vld [vmem:[%s0 + $0x78] sm:$0xff]
    %v34 = vld [vmem:[%s0 + $0x80] sm:$0xff]
    %v35 = vld [vmem:[%s0 + $0x88] sm:$0xff]
    %v36 = vld [vmem:[%s0 + $0x90] sm:$0xff]
    %v37 = vld [vmem:[%s0 + $0x98] sm:$0xff]
    %v38 = vld [vmem:[%s0 + $0xa0] sm:$0xff]
    %v39 = vld [vmem:[%s0 + $0xa8] sm:$0xff]
    %v40 = vld [vmem:[%s0 + $0xb0] sm:$0xff]
    %v41 = vld [vmem:[%s0 + $0xb8] sm:$0xff]
    %v42 = vld [vmem:[%s0 + $0xc0] sm:$0xff]
    %v43 = vld [vmem:[%s0 + $0xc8] sm:$0xff]
    %v44 = vld [vmem:[%s0 + $0xd0] sm:$0xff]
    %v45 = vld [vmem:[%s0 + $0xd8] sm:$0xff]
    %v46 = vld [vmem:[%s0 + $0xe0] sm:$0xff]
    %v47 = vld [vmem:[%s0 + $0xe8] sm:$0xff]
    %v48 = vld [vmem:[%s0 + $0xf0] sm:$0xff]
    %v49 = vld [vmem:[%s0 + $0xf8] sm:$0xff]
    %v50 = vld [vmem:[%s0 + $0x100] sm:$0xff]
    %v51 = vld [vmem:[%s0 + $0x108] sm:$0xff]
    %v52 = vld [vmem:[%s0 + $0x110] sm:$0xff]
    %v53 = vld [vmem:[%s0 + $0x118] sm:$0xff]
    %v54 = vld [vmem:[%s0 + $0x120] sm:$0xff]
    %v55 = vld [vmem:[%s0 + $0x128] sm:$0xff]
    %v56 = vld [vmem:[%s0 + $0x130] sm:$0xff]
    %v57 = vld [vmem:[%s0 + $0x138] sm:$0xff]
    %v58 = vld [vmem:[%s0 + $0x140] sm:$0xff]
    %v59 = vld [vmem:[%s0 + $0x148] sm:$0xff]
    %v60 = vld [vmem:[%s0 + $0x150] sm:$0xff]
    %v61 = vld [vmem:[%s0 + $0x158] sm:$0xff]
    %v62 = vld [vmem:[%s0 + $0x160] sm:$0xff]
    %v63 = vld [vmem:[%s0 + $0x168] sm:$0xff]
    %v64 = vld [vmem:[%s0 + $0x170] sm:$0xff]
    %v65 = vld [vmem:[%s0 + $0x178] sm:$0xff]
    %v66 = vld [vmem:[%s0 + $0x180] sm:$0xff]
    %v67 = vld [vmem:[%s0 + $0x188] sm:$0xff]
    %v68 = vld [vmem:[%s0 + $0x190] sm:$0xff]
    %v69 = vld [vmem:[%s0 + $0x198] sm:$0xff]
    %v70 = vld [vmem:[%s0 + $0x1a0] sm:$0xff]
    %v71 = vld [vmem:[%s0 + $0x1a8] sm:$0xff]
    %v72 = vld [vmem:[%s0 + $0x1b0] sm:$0xff]
    %v73 = vld [vmem:[%s0 + $0x1b8] sm:$0xff]
    %v74 = vld [vmem:[%s0 + $0x1c0] sm:$0xff]
    %v75 = vld [vmem:[%s0 + $0x1c8] sm:$0xff]
    %v76 = vld [vmem:[%s0 + $0x1d0] sm:$0xff]
    %v77 = vld [vmem:[%s0 + $0x1d8] sm:$0xff]
    %v78 = vld [vmem:[%s0 + $0x1e0] sm:$0xff]
    %v79 = vld [vmem:[%s0 + $0x1e8] sm:$0xff]
    %v80 = vld [vmem:[%s0 + $0x1f0] sm:$0xff]
    %v81 = vld [vmem:[%s0 + $0x1f8] sm:$0xff]
    %v82 = vlaneseq
    %v83 = vand.u32 %v82, 127
    %v84 = vld [vmem:[%s1] sm:$0xff]
    %v85 = vld [vmem:[%s1 + $0x8] sm:$0xff]
    %v86 = vld [vmem:[%s1 + $0x10] sm:$0xff]
    %v87 = vld [vmem:[%s1 + $0x18] sm:$0xff]
    %v88 = vld [vmem:[%s1 + $0x20] sm:$0xff]
    %v89 = vld [vmem:[%s1 + $0x28] sm:$0xff]
    %v90 = vld [vmem:[%s1 + $0x30] sm:$0xff]
    %v91 = vld [vmem:[%s1 + $0x38] sm:$0xff]
    %v92 = vld [vmem:[%s1 + $0x40] sm:$0xff]
    %v93 = vld [vmem:[%s1 + $0x48] sm:$0xff]
    %v94 = vld [vmem:[%s1 + $0x50] sm:$0xff]
    %v95 = vld [vmem:[%s1 + $0x58] sm:$0xff]
    %v96 = vld [vmem:[%s1 + $0x60] sm:$0xff]
    %v97 = vld [vmem:[%s1 + $0x68] sm:$0xff]
    %v98 = vld [vmem:[%s1 + $0x70] sm:$0xff]
    %v99 = vld [vmem:[%s1 + $0x78] sm:$0xff]
    %v100 = vld [vmem:[%s1 + $0x80] sm:$0xff]
    %v101 = vld [vmem:[%s1 + $0x88] sm:$0xff]
    %v102 = vld [vmem:[%s1 + $0x90] sm:$0xff]
    %v103 = vld [vmem:[%s1 + $0x98] sm:$0xff]
    %v104 = vld [vmem:[%s1 + $0xa0] sm:$0xff]
    %v105 = vld [vmem:[%s1 + $0xa8] sm:$0xff]
    %v106 = vld [vmem:[%s1 + $0xb0] sm:$0xff]
    %v107 = vld [vmem:[%s1 + $0xb8] sm:$0xff]
    %v108 = vld [vmem:[%s1 + $0xc0] sm:$0xff]
    %v109 = vld [vmem:[%s1 + $0xc8] sm:$0xff]
    %v110 = vld [vmem:[%s1 + $0xd0] sm:$0xff]
    %v111 = vld [vmem:[%s1 + $0xd8] sm:$0xff]
    %v112 = vld [vmem:[%s1 + $0xe0] sm:$0xff]
    %v113 = vld [vmem:[%s1 + $0xe8] sm:$0xff]
    %v114 = vld [vmem:[%s1 + $0xf0] sm:$0xff]
    %v115 = vld [vmem:[%s1 + $0xf8] sm:$0xff]
    %v116 = vld [vmem:[%s1 + $0x100] sm:$0xff]
    %v117 = vld [vmem:[%s1 + $0x108] sm:$0xff]
    %v118 = vld [vmem:[%s1 + $0x110] sm:$0xff]
    %v119 = vld [vmem:[%s1 + $0x118] sm:$0xff]
    %v120 = vld [vmem:[%s1 + $0x120] sm:$0xff]
    %v121 = vld [vmem:[%s1 + $0x128] sm:$0xff]
    %v122 = vld [vmem:[%s1 + $0x130] sm:$0xff]
    %v123 = vld [vmem:[%s1 + $0x138] sm:$0xff]
    %v124 = vld [vmem:[%s1 + $0x140] sm:$0xff]
    %v125 = vld [vmem:[%s1 + $0x148] sm:$0xff]
    %v126 = vld [vmem:[%s1 + $0x150] sm:$0xff]
    %v127 = vld [vmem:[%s1 + $0x158] sm:$0xff]
    %v128 = vld [vmem:[%s1 + $0x160] sm:$0xff]
    %v129 = vld [vmem:[%s1 + $0x168] sm:$0xff]
    %v130 = vld [vmem:[%s1 + $0x170] sm:$0xff]
    %v131 = vld [vmem:[%s1 + $0x178] sm:$0xff]
    %v132 = vld [vmem:[%s1 + $0x180] sm:$0xff]
    %v133 = vld [vmem:[%s1 + $0x188] sm:$0xff]
    %v134 = vld [vmem:[%s1 + $0x190] sm:$0xff]
    %v135 = vld [vmem:[%s1 + $0x198] sm:$0xff]
    %v136 = vld [vmem:[%s1 + $0x1a0] sm:$0xff]
    %v137 = vld [vmem:[%s1 + $0x1a8] sm:$0xff]
    %v138 = vld [vmem:[%s1 + $0x1b0] sm:$0xff]
    %v139 = vld [vmem:[%s1 + $0x1b8] sm:$0xff]
    %v140 = vld [vmem:[%s1 + $0x1c0] sm:$0xff]
    %v141 = vld [vmem:[%s1 + $0x1c8] sm:$0xff]
    %v142 = vld [vmem:[%s1 + $0x1d0] sm:$0xff]
    %v143 = vld [vmem:[%s1 + $0x1d8] sm:$0xff]
    %v144 = vld [vmem:[%s1 + $0x1e0] sm:$0xff]
    %v145 = vld [vmem:[%s1 + $0x1e8] sm:$0xff]
    %v146 = vld [vmem:[%s1 + $0x1f0] sm:$0xff]
    %v147 = vld [vmem:[%s1 + $0x1f8] sm:$0xff]
    %148 = vset.pattern.permute.xlu0 0
    %149 = vperm.xlu0 %148, %v84
    %v150 = vpop.permute.xlu0 %149
    %151 = vset.pattern.permute.xlu0 0
    %152 = vperm.xlu0 %151, %v85
    %v153 = vpop.permute.xlu0 %152
    %154 = vset.pattern.permute.xlu0 0
    %155 = vperm.xlu0 %154, %v86
    %v156 = vpop.permute.xlu0 %155
    %157 = vset.pattern.permute.xlu0 0
    %158 = vperm.xlu0 %157, %v87
    %v159 = vpop.permute.xlu0 %158
    %160 = vset.pattern.permute.xlu0 0
    %161 = vperm.xlu0 %160, %v88
    %v162 = vpop.permute.xlu0 %161
    %163 = vset.pattern.permute.xlu0 0
    %164 = vperm.xlu0 %163, %v89
    %v165 = vpop.permute.xlu0 %164
    %166 = vset.pattern.permute.xlu0 0
    %167 = vperm.xlu0 %166, %v90
    %v168 = vpop.permute.xlu0 %167
    %169 = vset.pattern.permute.xlu0 0
    %170 = vperm.xlu0 %169, %v91
    %v171 = vpop.permute.xlu0 %170
    %172 = vset.pattern.permute.xlu0 0
    %173 = vperm.xlu0 %172, %v92
    %v174 = vpop.permute.xlu0 %173
    %175 = vset.pattern.permute.xlu0 0
    %176 = vperm.xlu0 %175, %v93
    %v177 = vpop.permute.xlu0 %176
    %178 = vset.pattern.permute.xlu0 0
    %179 = vperm.xlu0 %178, %v94
    %v180 = vpop.permute.xlu0 %179
    %181 = vset.pattern.permute.xlu0 0
    %182 = vperm.xlu0 %181, %v95
    %v183 = vpop.permute.xlu0 %182
    %184 = vset.pattern.permute.xlu0 0
    %185 = vperm.xlu0 %184, %v96
    %v186 = vpop.permute.xlu0 %185
    %187 = vset.pattern.permute.xlu0 0
    %188 = vperm.xlu0 %187, %v97
    %v189 = vpop.permute.xlu0 %188
    %190 = vset.pattern.permute.xlu0 0
    %191 = vperm.xlu0 %190, %v98
    %v192 = vpop.permute.xlu0 %191
    %193 = vset.pattern.permute.xlu0 0
    %194 = vperm.xlu0 %193, %v99
    %v195 = vpop.permute.xlu0 %194
    %196 = vset.pattern.permute.xlu0 0
    %197 = vperm.xlu0 %196, %v100
    %v198 = vpop.permute.xlu0 %197
    %199 = vset.pattern.permute.xlu0 0
    %200 = vperm.xlu0 %199, %v101
    %v201 = vpop.permute.xlu0 %200
    %202 = vset.pattern.permute.xlu0 0
    %203 = vperm.xlu0 %202, %v102
    %v204 = vpop.permute.xlu0 %203
    %205 = vset.pattern.permute.xlu0 0
    %206 = vperm.xlu0 %205, %v103
    %v207 = vpop.permute.xlu0 %206
    %208 = vset.pattern.permute.xlu0 0
    %209 = vperm.xlu0 %208, %v104
    %v210 = vpop.permute.xlu0 %209
    %211 = vset.pattern.permute.xlu0 0
    %212 = vperm.xlu0 %211, %v105
    %v213 = vpop.permute.xlu0 %212
    %214 = vset.pattern.permute.xlu0 0
    %215 = vperm.xlu0 %214, %v106
    %v216 = vpop.permute.xlu0 %215
    %217 = vset.pattern.permute.xlu0 0
    %218 = vperm.xlu0 %217, %v107
    %v219 = vpop.permute.xlu0 %218
    %220 = vset.pattern.permute.xlu0 0
    %221 = vperm.xlu0 %220, %v108
    %v222 = vpop.permute.xlu0 %221
    %223 = vset.pattern.permute.xlu0 0
    %224 = vperm.xlu0 %223, %v109
    %v225 = vpop.permute.xlu0 %224
    %226 = vset.pattern.permute.xlu0 0
    %227 = vperm.xlu0 %226, %v110
    %v228 = vpop.permute.xlu0 %227
    %229 = vset.pattern.permute.xlu0 0
    %230 = vperm.xlu0 %229, %v111
    %v231 = vpop.permute.xlu0 %230
    %232 = vset.pattern.permute.xlu0 0
    %233 = vperm.xlu0 %232, %v112
    %v234 = vpop.permute.xlu0 %233
    %235 = vset.pattern.permute.xlu0 0
    %236 = vperm.xlu0 %235, %v113
    %v237 = vpop.permute.xlu0 %236
    %238 = vset.pattern.permute.xlu0 0
    %239 = vperm.xlu0 %238, %v114
    %v240 = vpop.permute.xlu0 %239
    %241 = vset.pattern.permute.xlu0 0
    %242 = vperm.xlu0 %241, %v115
    %v243 = vpop.permute.xlu0 %242
    %244 = vset.pattern.permute.xlu0 0
    %245 = vperm.xlu0 %244, %v116
    %v246 = vpop.permute.xlu0 %245
    %247 = vset.pattern.permute.xlu0 0
    %248 = vperm.xlu0 %247, %v117
    %v249 = vpop.permute.xlu0 %248
    %250 = vset.pattern.permute.xlu0 0
    %251 = vperm.xlu0 %250, %v118
    %v252 = vpop.permute.xlu0 %251
    %253 = vset.pattern.permute.xlu0 0
    %254 = vperm.xlu0 %253, %v119
    %v255 = vpop.permute.xlu0 %254
    %256 = vset.pattern.permute.xlu0 0
    %257 = vperm.xlu0 %256, %v120
    %v258 = vpop.permute.xlu0 %257
    %259 = vset.pattern.permute.xlu0 0
    %260 = vperm.xlu0 %259, %v121
    %v261 = vpop.permute.xlu0 %260
    %262 = vset.pattern.permute.xlu0 0
    %263 = vperm.xlu0 %262, %v122
    %v264 = vpop.permute.xlu0 %263
    %265 = vset.pattern.permute.xlu0 0
    %266 = vperm.xlu0 %265, %v123
    %v267 = vpop.permute.xlu0 %266
    %268 = vset.pattern.permute.xlu0 0
    %269 = vperm.xlu0 %268, %v124
    %v270 = vpop.permute.xlu0 %269
    %271 = vset.pattern.permute.xlu0 0
    %272 = vperm.xlu0 %271, %v125
    %v273 = vpop.permute.xlu0 %272
    %274 = vset.pattern.permute.xlu0 0
    %275 = vperm.xlu0 %274, %v126
    %v276 = vpop.permute.xlu0 %275
    %277 = vset.pattern.permute.xlu0 0
    %278 = vperm.xlu0 %277, %v127
    %v279 = vpop.permute.xlu0 %278
    %280 = vset.pattern.permute.xlu0 0
    %281 = vperm.xlu0 %280, %v128
    %v282 = vpop.permute.xlu0 %281
    %283 = vset.pattern.permute.xlu0 0
    %284 = vperm.xlu0 %283, %v129
    %v285 = vpop.permute.xlu0 %284
    %286 = vset.pattern.permute.xlu0 0
    %287 = vperm.xlu0 %286, %v130
    %v288 = vpop.permute.xlu0 %287
    %289 = vset.pattern.permute.xlu0 0
    %290 = vperm.xlu0 %289, %v131
    %v291 = vpop.permute.xlu0 %290
    %292 = vset.pattern.permute.xlu0 0
    %293 = vperm.xlu0 %292, %v132
    %v294 = vpop.permute.xlu0 %293
    %295 = vset.pattern.permute.xlu0 0
    %296 = vperm.xlu0 %295, %v133
    %v297 = vpop.permute.xlu0 %296
    %298 = vset.pattern.permute.xlu0 0
    %299 = vperm.xlu0 %298, %v134
    %v300 = vpop.permute.xlu0 %299
    %301 = vset.pattern.permute.xlu0 0
    %302 = vperm.xlu0 %301, %v135
    %v303 = vpop.permute.xlu0 %302
    %304 = vset.pattern.permute.xlu0 0
    %305 = vperm.xlu0 %304, %v136
    %v306 = vpop.permute.xlu0 %305
    %307 = vset.pattern.permute.xlu0 0
    %308 = vperm.xlu0 %307, %v137
    %v309 = vpop.permute.xlu0 %308
    %310 = vset.pattern.permute.xlu0 0
    %311 = vperm.xlu0 %310, %v138
    %v312 = vpop.permute.xlu0 %311
    %313 = vset.pattern.permute.xlu0 0
    %314 = vperm.xlu0 %313, %v139
    %v315 = vpop.permute.xlu0 %314
    %316 = vset.pattern.permute.xlu0 0
    %317 = vperm.xlu0 %316, %v140
    %v318 = vpop.permute.xlu0 %317
    %319 = vset.pattern.permute.xlu0 0
    %320 = vperm.xlu0 %319, %v141
    %v321 = vpop.permute.xlu0 %320
    %322 = vset.pattern.permute.xlu0 0
    %323 = vperm.xlu0 %322, %v142
    %v324 = vpop.permute.xlu0 %323
    %325 = vset.pattern.permute.xlu0 0
    %326 = vperm.xlu0 %325, %v143
    %v327 = vpop.permute.xlu0 %326
    %328 = vset.pattern.permute.xlu0 0
    %329 = vperm.xlu0 %328, %v144
    %v330 = vpop.permute.xlu0 %329
    %331 = vset.pattern.permute.xlu0 0
    %332 = vperm.xlu0 %331, %v145
    %v333 = vpop.permute.xlu0 %332
    %334 = vset.pattern.permute.xlu0 0
    %335 = vperm.xlu0 %334, %v146
    %v336 = vpop.permute.xlu0 %335
    %337 = vset.pattern.permute.xlu0 0
    %338 = vperm.xlu0 %337, %v147
    %v339 = vpop.permute.xlu0 %338
    %vm340 = vcmp.eq.s32.totalorder %v150, %v83
    %vm341 = vcmp.eq.s32.totalorder %v153, %v83
    %vm342 = vcmp.eq.s32.totalorder %v156, %v83
    %vm343 = vcmp.eq.s32.totalorder %v159, %v83
    %vm344 = vcmp.eq.s32.totalorder %v162, %v83
    %vm345 = vcmp.eq.s32.totalorder %v165, %v83
    %vm346 = vcmp.eq.s32.totalorder %v168, %v83
    %vm347 = vcmp.eq.s32.totalorder %v171, %v83
    %vm348 = vcmp.eq.s32.totalorder %v174, %v83
    %vm349 = vcmp.eq.s32.totalorder %v177, %v83
    %vm350 = vcmp.eq.s32.totalorder %v180, %v83
    %vm351 = vcmp.eq.s32.totalorder %v183, %v83
    %vm352 = vcmp.eq.s32.totalorder %v186, %v83
    %vm353 = vcmp.eq.s32.totalorder %v189, %v83
    %vm354 = vcmp.eq.s32.totalorder %v192, %v83
    %vm355 = vcmp.eq.s32.totalorder %v195, %v83
    %vm356 = vcmp.eq.s32.totalorder %v198, %v83
    %vm357 = vcmp.eq.s32.totalorder %v201, %v83
    %vm358 = vcmp.eq.s32.totalorder %v204, %v83
    %vm359 = vcmp.eq.s32.totalorder %v207, %v83
    %vm360 = vcmp.eq.s32.totalorder %v210, %v83
    %vm361 = vcmp.eq.s32.totalorder %v213, %v83
    %vm362 = vcmp.eq.s32.totalorder %v216, %v83
    %vm363 = vcmp.eq.s32.totalorder %v219, %v83
    %vm364 = vcmp.eq.s32.totalorder %v222, %v83
    %vm365 = vcmp.eq.s32.totalorder %v225, %v83
    %vm366 = vcmp.eq.s32.totalorder %v228, %v83
    %vm367 = vcmp.eq.s32.totalorder %v231, %v83
    %vm368 = vcmp.eq.s32.totalorder %v234, %v83
    %vm369 = vcmp.eq.s32.totalorder %v237, %v83
    %vm370 = vcmp.eq.s32.totalorder %v240, %v83
    %vm371 = vcmp.eq.s32.totalorder %v243, %v83
    %vm372 = vcmp.eq.s32.totalorder %v246, %v83
    %vm373 = vcmp.eq.s32.totalorder %v249, %v83
    %vm374 = vcmp.eq.s32.totalorder %v252, %v83
    %vm375 = vcmp.eq.s32.totalorder %v255, %v83
    %vm376 = vcmp.eq.s32.totalorder %v258, %v83
    %vm377 = vcmp.eq.s32.totalorder %v261, %v83
    %vm378 = vcmp.eq.s32.totalorder %v264, %v83
    %vm379 = vcmp.eq.s32.totalorder %v267, %v83
    %vm380 = vcmp.eq.s32.totalorder %v270, %v83
    %vm381 = vcmp.eq.s32.totalorder %v273, %v83
    %vm382 = vcmp.eq.s32.totalorder %v276, %v83
    %vm383 = vcmp.eq.s32.totalorder %v279, %v83
    %vm384 = vcmp.eq.s32.totalorder %v282, %v83
    %vm385 = vcmp.eq.s32.totalorder %v285, %v83
    %vm386 = vcmp.eq.s32.totalorder %v288, %v83
    %vm387 = vcmp.eq.s32.totalorder %v291, %v83
    %vm388 = vcmp.eq.s32.totalorder %v294, %v83
    %vm389 = vcmp.eq.s32.totalorder %v297, %v83
    %vm390 = vcmp.eq.s32.totalorder %v300, %v83
    %vm391 = vcmp.eq.s32.totalorder %v303, %v83
    %vm392 = vcmp.eq.s32.totalorder %v306, %v83
    %vm393 = vcmp.eq.s32.totalorder %v309, %v83
    %vm394 = vcmp.eq.s32.totalorder %v312, %v83
    %vm395 = vcmp.eq.s32.totalorder %v315, %v83
    %vm396 = vcmp.eq.s32.totalorder %v318, %v83
    %vm397 = vcmp.eq.s32.totalorder %v321, %v83
    %vm398 = vcmp.eq.s32.totalorder %v324, %v83
    %vm399 = vcmp.eq.s32.totalorder %v327, %v83
    %vm400 = vcmp.eq.s32.totalorder %v330, %v83
    %vm401 = vcmp.eq.s32.totalorder %v333, %v83
    %vm402 = vcmp.eq.s32.totalorder %v336, %v83
    %vm403 = vcmp.eq.s32.totalorder %v339, %v83
    %v404 = vsel %vm340, 1, 0
    %v405 = vsel %vm341, 1, 0
    %v406 = vsel %vm342, 1, 0
    %v407 = vsel %vm343, 1, 0
    %v408 = vsel %vm344, 1, 0
    %v409 = vsel %vm345, 1, 0
    %v410 = vsel %vm346, 1, 0
    %v411 = vsel %vm347, 1, 0
    %v412 = vsel %vm348, 1, 0
    %v413 = vsel %vm349, 1, 0
    %v414 = vsel %vm350, 1, 0
    %v415 = vsel %vm351, 1, 0
    %v416 = vsel %vm352, 1, 0
    %v417 = vsel %vm353, 1, 0
    %v418 = vsel %vm354, 1, 0
    %v419 = vsel %vm355, 1, 0
    %v420 = vsel %vm356, 1, 0
    %v421 = vsel %vm357, 1, 0
    %v422 = vsel %vm358, 1, 0
    %v423 = vsel %vm359, 1, 0
    %v424 = vsel %vm360, 1, 0
    %v425 = vsel %vm361, 1, 0
    %v426 = vsel %vm362, 1, 0
    %v427 = vsel %vm363, 1, 0
    %v428 = vsel %vm364, 1, 0
    %v429 = vsel %vm365, 1, 0
    %v430 = vsel %vm366, 1, 0
    %v431 = vsel %vm367, 1, 0
    %v432 = vsel %vm368, 1, 0
    %v433 = vsel %vm369, 1, 0
    %v434 = vsel %vm370, 1, 0
    %v435 = vsel %vm371, 1, 0
    %v436 = vsel %vm372, 1, 0
    %v437 = vsel %vm373, 1, 0
    %v438 = vsel %vm374, 1, 0
    %v439 = vsel %vm375, 1, 0
    %v440 = vsel %vm376, 1, 0
    %v441 = vsel %vm377, 1, 0
    %v442 = vsel %vm378, 1, 0
    %v443 = vsel %vm379, 1, 0
    %v444 = vsel %vm380, 1, 0
    %v445 = vsel %vm381, 1, 0
    %v446 = vsel %vm382, 1, 0
    %v447 = vsel %vm383, 1, 0
    %v448 = vsel %vm384, 1, 0
    %v449 = vsel %vm385, 1, 0
    %v450 = vsel %vm386, 1, 0
    %v451 = vsel %vm387, 1, 0
    %v452 = vsel %vm388, 1, 0
    %v453 = vsel %vm389, 1, 0
    %v454 = vsel %vm390, 1, 0
    %v455 = vsel %vm391, 1, 0
    %v456 = vsel %vm392, 1, 0
    %v457 = vsel %vm393, 1, 0
    %v458 = vsel %vm394, 1, 0
    %v459 = vsel %vm395, 1, 0
    %v460 = vsel %vm396, 1, 0
    %v461 = vsel %vm397, 1, 0
    %v462 = vsel %vm398, 1, 0
    %v463 = vsel %vm399, 1, 0
    %v464 = vsel %vm400, 1, 0
    %v465 = vsel %vm401, 1, 0
    %v466 = vsel %vm402, 1, 0
    %v467 = vsel %vm403, 1, 0
    %v468 = vcvt.s32.f32 %v404
    %v469 = vcvt.s32.f32 %v405
    %v470 = vcvt.s32.f32 %v406
    %v471 = vcvt.s32.f32 %v407
    %v472 = vcvt.s32.f32 %v408
    %v473 = vcvt.s32.f32 %v409
    %v474 = vcvt.s32.f32 %v410
    %v475 = vcvt.s32.f32 %v411
    %v476 = vcvt.s32.f32 %v412
    %v477 = vcvt.s32.f32 %v413
    %v478 = vcvt.s32.f32 %v414
    %v479 = vcvt.s32.f32 %v415
    %v480 = vcvt.s32.f32 %v416
    %v481 = vcvt.s32.f32 %v417
    %v482 = vcvt.s32.f32 %v418
    %v483 = vcvt.s32.f32 %v419
    %v484 = vcvt.s32.f32 %v420
    %v485 = vcvt.s32.f32 %v421
    %v486 = vcvt.s32.f32 %v422
    %v487 = vcvt.s32.f32 %v423
    %v488 = vcvt.s32.f32 %v424
    %v489 = vcvt.s32.f32 %v425
    %v490 = vcvt.s32.f32 %v426
    %v491 = vcvt.s32.f32 %v427
    %v492 = vcvt.s32.f32 %v428
    %v493 = vcvt.s32.f32 %v429
    %v494 = vcvt.s32.f32 %v430
    %v495 = vcvt.s32.f32 %v431
    %v496 = vcvt.s32.f32 %v432
    %v497 = vcvt.s32.f32 %v433
    %v498 = vcvt.s32.f32 %v434
    %v499 = vcvt.s32.f32 %v435
    %v500 = vcvt.s32.f32 %v436
    %v501 = vcvt.s32.f32 %v437
    %v502 = vcvt.s32.f32 %v438
    %v503 = vcvt.s32.f32 %v439
    %v504 = vcvt.s32.f32 %v440
    %v505 = vcvt.s32.f32 %v441
    %v506 = vcvt.s32.f32 %v442
    %v507 = vcvt.s32.f32 %v443
    %v508 = vcvt.s32.f32 %v444
    %v509 = vcvt.s32.f32 %v445
    %v510 = vcvt.s32.f32 %v446
    %v511 = vcvt.s32.f32 %v447
    %v512 = vcvt.s32.f32 %v448
    %v513 = vcvt.s32.f32 %v449
    %v514 = vcvt.s32.f32 %v450
    %v515 = vcvt.s32.f32 %v451
    %v516 = vcvt.s32.f32 %v452
    %v517 = vcvt.s32.f32 %v453
    %v518 = vcvt.s32.f32 %v454
    %v519 = vcvt.s32.f32 %v455
    %v520 = vcvt.s32.f32 %v456
    %v521 = vcvt.s32.f32 %v457
    %v522 = vcvt.s32.f32 %v458
    %v523 = vcvt.s32.f32 %v459
    %v524 = vcvt.s32.f32 %v460
    %v525 = vcvt.s32.f32 %v461
    %v526 = vcvt.s32.f32 %v462
    %v527 = vcvt.s32.f32 %v463
    %v528 = vcvt.s32.f32 %v464
    %v529 = vcvt.s32.f32 %v465
    %v530 = vcvt.s32.f32 %v466
    %v531 = vcvt.s32.f32 %v467
    %v532 = vand.u32 2147483647, %v18
    %v533 = vand.u32 2147483647, %v19
    %v534 = vand.u32 2147483647, %v20
    %v535 = vand.u32 2147483647, %v21
    %v536 = vand.u32 2147483647, %v22
    %v537 = vand.u32 2147483647, %v23
    %v538 = vand.u32 2147483647, %v24
    %v539 = vand.u32 2147483647, %v25
    %v540 = vand.u32 2147483647, %v26
    %v541 = vand.u32 2147483647, %v27
    %v542 = vand.u32 2147483647, %v28
    %v543 = vand.u32 2147483647, %v29
    %v544 = vand.u32 2147483647, %v30
    %v545 = vand.u32 2147483647, %v31
    %v546 = vand.u32 2147483647, %v32
    %v547 = vand.u32 2147483647, %v33
    %v548 = vand.u32 2147483647, %v34
    %v549 = vand.u32 2147483647, %v35
    %v550 = vand.u32 2147483647, %v36
    %v551 = vand.u32 2147483647, %v37
    %v552 = vand.u32 2147483647, %v38
    %v553 = vand.u32 2147483647, %v39
    %v554 = vand.u32 2147483647, %v40
    %v555 = vand.u32 2147483647, %v41
    %v556 = vand.u32 2147483647, %v42
    %v557 = vand.u32 2147483647, %v43
    %v558 = vand.u32 2147483647, %v44
    %v559 = vand.u32 2147483647, %v45
    %v560 = vand.u32 2147483647, %v46
    %v561 = vand.u32 2147483647, %v47
    %v562 = vand.u32 2147483647, %v48
    %v563 = vand.u32 2147483647, %v49
    %v564 = vand.u32 2147483647, %v50
    %v565 = vand.u32 2147483647, %v51
    %v566 = vand.u32 2147483647, %v52
    %v567 = vand.u32 2147483647, %v53
    %v568 = vand.u32 2147483647, %v54
    %v569 = vand.u32 2147483647, %v55
    %v570 = vand.u32 2147483647, %v56
    %v571 = vand.u32 2147483647, %v57
    %v572 = vand.u32 2147483647, %v58
    %v573 = vand.u32 2147483647, %v59
    %v574 = vand.u32 2147483647, %v60
    %v575 = vand.u32 2147483647, %v61
    %v576 = vand.u32 2147483647, %v62
    %v577 = vand.u32 2147483647, %v63
    %v578 = vand.u32 2147483647, %v64
    %v579 = vand.u32 2147483647, %v65
    %v580 = vand.u32 2147483647, %v66
    %v581 = vand.u32 2147483647, %v67
    %v582 = vand.u32 2147483647, %v68
    %v583 = vand.u32 2147483647, %v69
    %v584 = vand.u32 2147483647, %v70
    %v585 = vand.u32 2147483647, %v71
    %v586 = vand.u32 2147483647, %v72
    %v587 = vand.u32 2147483647, %v73
    %v588 = vand.u32 2147483647, %v74
    %v589 = vand.u32 2147483647, %v75
    %v590 = vand.u32 2147483647, %v76
    %v591 = vand.u32 2147483647, %v77
    %v592 = vand.u32 2147483647, %v78
    %v593 = vand.u32 2147483647, %v79
    %v594 = vand.u32 2147483647, %v80
    %v595 = vand.u32 2147483647, %v81
    %v596 = vsub.f32 0.0, %v532
    %v597 = vsub.f32 0.0, %v533
    %v598 = vsub.f32 0.0, %v534
    %v599 = vsub.f32 0.0, %v535
    %v600 = vsub.f32 0.0, %v536
    %v601 = vsub.f32 0.0, %v537
    %v602 = vsub.f32 0.0, %v538
    %v603 = vsub.f32 0.0, %v539
    %v604 = vsub.f32 0.0, %v540
    %v605 = vsub.f32 0.0, %v541
    %v606 = vsub.f32 0.0, %v542
    %v607 = vsub.f32 0.0, %v543
    %v608 = vsub.f32 0.0, %v544
    %v609 = vsub.f32 0.0, %v545
    %v610 = vsub.f32 0.0, %v546
    %v611 = vsub.f32 0.0, %v547
    %v612 = vsub.f32 0.0, %v548
    %v613 = vsub.f32 0.0, %v549
    %v614 = vsub.f32 0.0, %v550
    %v615 = vsub.f32 0.0, %v551
    %v616 = vsub.f32 0.0, %v552
    %v617 = vsub.f32 0.0, %v553
    %v618 = vsub.f32 0.0, %v554
    %v619 = vsub.f32 0.0, %v555
    %v620 = vsub.f32 0.0, %v556
    %v621 = vsub.f32 0.0, %v557
    %v622 = vsub.f32 0.0, %v558
    %v623 = vsub.f32 0.0, %v559
    %v624 = vsub.f32 0.0, %v560
    %v625 = vsub.f32 0.0, %v561
    %v626 = vsub.f32 0.0, %v562
    %v627 = vsub.f32 0.0, %v563
    %v628 = vsub.f32 0.0, %v564
    %v629 = vsub.f32 0.0, %v565
    %v630 = vsub.f32 0.0, %v566
    %v631 = vsub.f32 0.0, %v567
    %v632 = vsub.f32 0.0, %v568
    %v633 = vsub.f32 0.0, %v569
    %v634 = vsub.f32 0.0, %v570
    %v635 = vsub.f32 0.0, %v571
    %v636 = vsub.f32 0.0, %v572
    %v637 = vsub.f32 0.0, %v573
    %v638 = vsub.f32 0.0, %v574
    %v639 = vsub.f32 0.0, %v575
    %v640 = vsub.f32 0.0, %v576
    %v641 = vsub.f32 0.0, %v577
    %v642 = vsub.f32 0.0, %v578
    %v643 = vsub.f32 0.0, %v579
    %v644 = vsub.f32 0.0, %v580
    %v645 = vsub.f32 0.0, %v581
    %v646 = vsub.f32 0.0, %v582
    %v647 = vsub.f32 0.0, %v583
    %v648 = vsub.f32 0.0, %v584
    %v649 = vsub.f32 0.0, %v585
    %v650 = vsub.f32 0.0, %v586
    %v651 = vsub.f32 0.0, %v587
    %v652 = vsub.f32 0.0, %v588
    %v653 = vsub.f32 0.0, %v589
    %v654 = vsub.f32 0.0, %v590
    %v655 = vsub.f32 0.0, %v591
    %v656 = vsub.f32 0.0, %v592
    %v657 = vsub.f32 0.0, %v593
    %v658 = vsub.f32 0.0, %v594
    %v659 = vsub.f32 0.0, %v595
    %v660 = vmul.f32 %v596, 1.442695
    %v661 = vpow.pop %v660
    %v662 = vmul.f32 %v597, 1.442695
    %v663 = vpow.pop %v662
    %v664 = vmul.f32 %v598, 1.442695
    %v665 = vpow.pop %v664
    %v666 = vmul.f32 %v599, 1.442695
    %v667 = vpow.pop %v666
    %v668 = vmul.f32 %v600, 1.442695
    %v669 = vpow.pop %v668
    %v670 = vmul.f32 %v601, 1.442695
    %v671 = vpow.pop %v670
    %v672 = vmul.f32 %v602, 1.442695
    %v673 = vpow.pop %v672
    %v674 = vmul.f32 %v603, 1.442695
    %v675 = vpow.pop %v674
    %v676 = vmul.f32 %v604, 1.442695
    %v677 = vpow.pop %v676
    %v678 = vmul.f32 %v605, 1.442695
    %v679 = vpow.pop %v678
    %v680 = vmul.f32 %v606, 1.442695
    %v681 = vpow.pop %v680
    %v682 = vmul.f32 %v607, 1.442695
    %v683 = vpow.pop %v682
    %v684 = vmul.f32 %v608, 1.442695
    %v685 = vpow.pop %v684
    %v686 = vmul.f32 %v609, 1.442695
    %v687 = vpow.pop %v686
    %v688 = vmul.f32 %v610, 1.442695
    %v689 = vpow.pop %v688
    %v690 = vmul.f32 %v611, 1.442695
    %v691 = vpow.pop %v690
    %v692 = vmul.f32 %v612, 1.442695
    %v693 = vpow.pop %v692
    %v694 = vmul.f32 %v613, 1.442695
    %v695 = vpow.pop %v694
    %v696 = vmul.f32 %v614, 1.442695
    %v697 = vpow.pop %v696
    %v698 = vmul.f32 %v615, 1.442695
    %v699 = vpow.pop %v698
    %v700 = vmul.f32 %v616, 1.442695
    %v701 = vpow.pop %v700
    %v702 = vmul.f32 %v617, 1.442695
    %v703 = vpow.pop %v702
    %v704 = vmul.f32 %v618, 1.442695
    %v705 = vpow.pop %v704
    %v706 = vmul.f32 %v619, 1.442695
    %v707 = vpow.pop %v706
    %v708 = vmul.f32 %v620, 1.442695
    %v709 = vpow.pop %v708
    %v710 = vmul.f32 %v621, 1.442695
    %v711 = vpow.pop %v710
    %v712 = vmul.f32 %v622, 1.442695
    %v713 = vpow.pop %v712
    %v714 = vmul.f32 %v623, 1.442695
    %v715 = vpow.pop %v714
    %v716 = vmul.f32 %v624, 1.442695
    %v717 = vpow.pop %v716
    %v718 = vmul.f32 %v625, 1.442695
    %v719 = vpow.pop %v718
    %v720 = vmul.f32 %v626, 1.442695
    %v721 = vpow.pop %v720
    %v722 = vmul.f32 %v627, 1.442695
    %v723 = vpow.pop %v722
    %v724 = vmul.f32 %v628, 1.442695
    %v725 = vpow.pop %v724
    %v726 = vmul.f32 %v629, 1.442695
    %v727 = vpow.pop %v726
    %v728 = vmul.f32 %v630, 1.442695
    %v729 = vpow.pop %v728
    %v730 = vmul.f32 %v631, 1.442695
    %v731 = vpow.pop %v730
    %v732 = vmul.f32 %v632, 1.442695
    %v733 = vpow.pop %v732
    %v734 = vmul.f32 %v633, 1.442695
    %v735 = vpow.pop %v734
    %v736 = vmul.f32 %v634, 1.442695
    %v737 = vpow.pop %v736
    %v738 = vmul.f32 %v635, 1.442695
    %v739 = vpow.pop %v738
    %v740 = vmul.f32 %v636, 1.442695
    %v741 = vpow.pop %v740
    %v742 = vmul.f32 %v637, 1.442695
    %v743 = vpow.pop %v742
    %v744 = vmul.f32 %v638, 1.442695
    %v745 = vpow.pop %v744
    %v746 = vmul.f32 %v639, 1.442695
    %v747 = vpow.pop %v746
    %v748 = vmul.f32 %v640, 1.442695
    %v749 = vpow.pop %v748
    %v750 = vmul.f32 %v641, 1.442695
    %v751 = vpow.pop %v750
    %v752 = vmul.f32 %v642, 1.442695
    %v753 = vpow.pop %v752
    %v754 = vmul.f32 %v643, 1.442695
    %v755 = vpow.pop %v754
    %v756 = vmul.f32 %v644, 1.442695
    %v757 = vpow.pop %v756
    %v758 = vmul.f32 %v645, 1.442695
    %v759 = vpow.pop %v758
    %v760 = vmul.f32 %v646, 1.442695
    %v761 = vpow.pop %v760
    %v762 = vmul.f32 %v647, 1.442695
    %v763 = vpow.pop %v762
    %v764 = vmul.f32 %v648, 1.442695
    %v765 = vpow.pop %v764
    %v766 = vmul.f32 %v649, 1.442695
    %v767 = vpow.pop %v766
    %v768 = vmul.f32 %v650, 1.442695
    %v769 = vpow.pop %v768
    %v770 = vmul.f32 %v651, 1.442695
    %v771 = vpow.pop %v770
    %v772 = vmul.f32 %v652, 1.442695
    %v773 = vpow.pop %v772
    %v774 = vmul.f32 %v653, 1.442695
    %v775 = vpow.pop %v774
    %v776 = vmul.f32 %v654, 1.442695
    %v777 = vpow.pop %v776
    %v778 = vmul.f32 %v655, 1.442695
    %v779 = vpow.pop %v778
    %v780 = vmul.f32 %v656, 1.442695
    %v781 = vpow.pop %v780
    %v782 = vmul.f32 %v657, 1.442695
    %v783 = vpow.pop %v782
    %v784 = vmul.f32 %v658, 1.442695
    %v785 = vpow.pop %v784
    %v786 = vmul.f32 %v659, 1.442695
    %v787 = vpow.pop %v786
    %v788 = vadd.f32 %v661, 1.0
    %v789 = vadd.f32 %v663, 1.0
    %v790 = vadd.f32 %v665, 1.0
    %v791 = vadd.f32 %v667, 1.0
    %v792 = vadd.f32 %v669, 1.0
    %v793 = vadd.f32 %v671, 1.0
    %v794 = vadd.f32 %v673, 1.0
    %v795 = vadd.f32 %v675, 1.0
    %v796 = vadd.f32 %v677, 1.0
    %v797 = vadd.f32 %v679, 1.0
    %v798 = vadd.f32 %v681, 1.0
    %v799 = vadd.f32 %v683, 1.0
    %v800 = vadd.f32 %v685, 1.0
    %v801 = vadd.f32 %v687, 1.0
    %v802 = vadd.f32 %v689, 1.0
    %v803 = vadd.f32 %v691, 1.0
    %v804 = vadd.f32 %v693, 1.0
    %v805 = vadd.f32 %v695, 1.0
    %v806 = vadd.f32 %v697, 1.0
    %v807 = vadd.f32 %v699, 1.0
    %v808 = vadd.f32 %v701, 1.0
    %v809 = vadd.f32 %v703, 1.0
    %v810 = vadd.f32 %v705, 1.0
    %v811 = vadd.f32 %v707, 1.0
    %v812 = vadd.f32 %v709, 1.0
    %v813 = vadd.f32 %v711, 1.0
    %v814 = vadd.f32 %v713, 1.0
    %v815 = vadd.f32 %v715, 1.0
    %v816 = vadd.f32 %v717, 1.0
    %v817 = vadd.f32 %v719, 1.0
    %v818 = vadd.f32 %v721, 1.0
    %v819 = vadd.f32 %v723, 1.0
    %v820 = vadd.f32 %v725, 1.0
    %v821 = vadd.f32 %v727, 1.0
    %v822 = vadd.f32 %v729, 1.0
    %v823 = vadd.f32 %v731, 1.0
    %v824 = vadd.f32 %v733, 1.0
    %v825 = vadd.f32 %v735, 1.0
    %v826 = vadd.f32 %v737, 1.0
    %v827 = vadd.f32 %v739, 1.0
    %v828 = vadd.f32 %v741, 1.0
    %v829 = vadd.f32 %v743, 1.0
    %v830 = vadd.f32 %v745, 1.0
    %v831 = vadd.f32 %v747, 1.0
    %v832 = vadd.f32 %v749, 1.0
    %v833 = vadd.f32 %v751, 1.0
    %v834 = vadd.f32 %v753, 1.0
    %v835 = vadd.f32 %v755, 1.0
    %v836 = vadd.f32 %v757, 1.0
    %v837 = vadd.f32 %v759, 1.0
    %v838 = vadd.f32 %v761, 1.0
    %v839 = vadd.f32 %v763, 1.0
    %v840 = vadd.f32 %v765, 1.0
    %v841 = vadd.f32 %v767, 1.0
    %v842 = vadd.f32 %v769, 1.0
    %v843 = vadd.f32 %v771, 1.0
    %v844 = vadd.f32 %v773, 1.0
    %v845 = vadd.f32 %v775, 1.0
    %v846 = vadd.f32 %v777, 1.0
    %v847 = vadd.f32 %v779, 1.0
    %v848 = vadd.f32 %v781, 1.0
    %v849 = vadd.f32 %v783, 1.0
    %v850 = vadd.f32 %v785, 1.0
    %v851 = vadd.f32 %v787, 1.0
    %v852 = vrcp.pop %v788
    %v853 = vmul.f32 1.0, %v852
    %v854 = vrcp.pop %v789
    %v855 = vmul.f32 1.0, %v854
    %v856 = vrcp.pop %v790
    %v857 = vmul.f32 1.0, %v856
    %v858 = vrcp.pop %v791
    %v859 = vmul.f32 1.0, %v858
    %v860 = vrcp.pop %v792
    %v861 = vmul.f32 1.0, %v860
    %v862 = vrcp.pop %v793
    %v863 = vmul.f32 1.0, %v862
    %v864 = vrcp.pop %v794
    %v865 = vmul.f32 1.0, %v864
    %v866 = vrcp.pop %v795
    %v867 = vmul.f32 1.0, %v866
    %v868 = vrcp.pop %v796
    %v869 = vmul.f32 1.0, %v868
    %v870 = vrcp.pop %v797
    %v871 = vmul.f32 1.0, %v870
    %v872 = vrcp.pop %v798
    %v873 = vmul.f32 1.0, %v872
    %v874 = vrcp.pop %v799
    %v875 = vmul.f32 1.0, %v874
    %v876 = vrcp.pop %v800
    %v877 = vmul.f32 1.0, %v876
    %v878 = vrcp.pop %v801
    %v879 = vmul.f32 1.0, %v878
    %v880 = vrcp.pop %v802
    %v881 = vmul.f32 1.0, %v880
    %v882 = vrcp.pop %v803
    %v883 = vmul.f32 1.0, %v882
    %v884 = vrcp.pop %v804
    %v885 = vmul.f32 1.0, %v884
    %v886 = vrcp.pop %v805
    %v887 = vmul.f32 1.0, %v886
    %v888 = vrcp.pop %v806
    %v889 = vmul.f32 1.0, %v888
    %v890 = vrcp.pop %v807
    %v891 = vmul.f32 1.0, %v890
    %v892 = vrcp.pop %v808
    %v893 = vmul.f32 1.0, %v892
    %v894 = vrcp.pop %v809
    %v895 = vmul.f32 1.0, %v894
    %v896 = vrcp.pop %v810
    %v897 = vmul.f32 1.0, %v896
    %v898 = vrcp.pop %v811
    %v899 = vmul.f32 1.0, %v898
    %v900 = vrcp.pop %v812
    %v901 = vmul.f32 1.0, %v900
    %v902 = vrcp.pop %v813
    %v903 = vmul.f32 1.0, %v902
    %v904 = vrcp.pop %v814
    %v905 = vmul.f32 1.0, %v904
    %v906 = vrcp.pop %v815
    %v907 = vmul.f32 1.0, %v906
    %v908 = vrcp.pop %v816
    %v909 = vmul.f32 1.0, %v908
    %v910 = vrcp.pop %v817
    %v911 = vmul.f32 1.0, %v910
    %v912 = vrcp.pop %v818
    %v913 = vmul.f32 1.0, %v912
    %v914 = vrcp.pop %v819
    %v915 = vmul.f32 1.0, %v914
    %v916 = vrcp.pop %v820
    %v917 = vmul.f32 1.0, %v916
    %v918 = vrcp.pop %v821
    %v919 = vmul.f32 1.0, %v918
    %v920 = vrcp.pop %v822
    %v921 = vmul.f32 1.0, %v920
    %v922 = vrcp.pop %v823
    %v923 = vmul.f32 1.0, %v922
    %v924 = vrcp.pop %v824
    %v925 = vmul.f32 1.0, %v924
    %v926 = vrcp.pop %v825
    %v927 = vmul.f32 1.0, %v926
    %v928 = vrcp.pop %v826
    %v929 = vmul.f32 1.0, %v928
    %v930 = vrcp.pop %v827
    %v931 = vmul.f32 1.0, %v930
    %v932 = vrcp.pop %v828
    %v933 = vmul.f32 1.0, %v932
    %v934 = vrcp.pop %v829
    %v935 = vmul.f32 1.0, %v934
    %v936 = vrcp.pop %v830
    %v937 = vmul.f32 1.0, %v936
    %v938 = vrcp.pop %v831
    %v939 = vmul.f32 1.0, %v938
    %v940 = vrcp.pop %v832
    %v941 = vmul.f32 1.0, %v940
    %v942 = vrcp.pop %v833
    %v943 = vmul.f32 1.0, %v942
    %v944 = vrcp.pop %v834
    %v945 = vmul.f32 1.0, %v944
    %v946 = vrcp.pop %v835
    %v947 = vmul.f32 1.0, %v946
    %v948 = vrcp.pop %v836
    %v949 = vmul.f32 1.0, %v948
    %v950 = vrcp.pop %v837
    %v951 = vmul.f32 1.0, %v950
    %v952 = vrcp.pop %v838
    %v953 = vmul.f32 1.0, %v952
    %v954 = vrcp.pop %v839
    %v955 = vmul.f32 1.0, %v954
    %v956 = vrcp.pop %v840
    %v957 = vmul.f32 1.0, %v956
    %v958 = vrcp.pop %v841
    %v959 = vmul.f32 1.0, %v958
    %v960 = vrcp.pop %v842
    %v961 = vmul.f32 1.0, %v960
    %v962 = vrcp.pop %v843
    %v963 = vmul.f32 1.0, %v962
    %v964 = vrcp.pop %v844
    %v965 = vmul.f32 1.0, %v964
    %v966 = vrcp.pop %v845
    %v967 = vmul.f32 1.0, %v966
    %v968 = vrcp.pop %v846
    %v969 = vmul.f32 1.0, %v968
    %v970 = vrcp.pop %v847
    %v971 = vmul.f32 1.0, %v970
    %v972 = vrcp.pop %v848
    %v973 = vmul.f32 1.0, %v972
    %v974 = vrcp.pop %v849
    %v975 = vmul.f32 1.0, %v974
    %v976 = vrcp.pop %v850
    %v977 = vmul.f32 1.0, %v976
    %v978 = vrcp.pop %v851
    %v979 = vmul.f32 1.0, %v978
    %vm980 = vcmp.gt.f32.partialorder %v468, 0.5
    %vm981 = vcmp.gt.f32.partialorder %v469, 0.5
    %vm982 = vcmp.gt.f32.partialorder %v470, 0.5
    %vm983 = vcmp.gt.f32.partialorder %v471, 0.5
    %vm984 = vcmp.gt.f32.partialorder %v472, 0.5
    %vm985 = vcmp.gt.f32.partialorder %v473, 0.5
    %vm986 = vcmp.gt.f32.partialorder %v474, 0.5
    %vm987 = vcmp.gt.f32.partialorder %v475, 0.5
    %vm988 = vcmp.gt.f32.partialorder %v476, 0.5
    %vm989 = vcmp.gt.f32.partialorder %v477, 0.5
    %vm990 = vcmp.gt.f32.partialorder %v478, 0.5
    %vm991 = vcmp.gt.f32.partialorder %v479, 0.5
    %vm992 = vcmp.gt.f32.partialorder %v480, 0.5
    %vm993 = vcmp.gt.f32.partialorder %v481, 0.5
    %vm994 = vcmp.gt.f32.partialorder %v482, 0.5
    %vm995 = vcmp.gt.f32.partialorder %v483, 0.5
    %vm996 = vcmp.gt.f32.partialorder %v484, 0.5
    %vm997 = vcmp.gt.f32.partialorder %v485, 0.5
    %vm998 = vcmp.gt.f32.partialorder %v486, 0.5
    %vm999 = vcmp.gt.f32.partialorder %v487, 0.5
    %vm1000 = vcmp.gt.f32.partialorder %v488, 0.5
    %vm1001 = vcmp.gt.f32.partialorder %v489, 0.5
    %vm1002 = vcmp.gt.f32.partialorder %v490, 0.5
    %vm1003 = vcmp.gt.f32.partialorder %v491, 0.5
    %vm1004 = vcmp.gt.f32.partialorder %v492, 0.5
    %vm1005 = vcmp.gt.f32.partialorder %v493, 0.5
    %vm1006 = vcmp.gt.f32.partialorder %v494, 0.5
    %vm1007 = vcmp.gt.f32.partialorder %v495, 0.5
    %vm1008 = vcmp.gt.f32.partialorder %v496, 0.5
    %vm1009 = vcmp.gt.f32.partialorder %v497, 0.5
    %vm1010 = vcmp.gt.f32.partialorder %v498, 0.5
    %vm1011 = vcmp.gt.f32.partialorder %v499, 0.5
    %vm1012 = vcmp.gt.f32.partialorder %v500, 0.5
    %vm1013 = vcmp.gt.f32.partialorder %v501, 0.5
    %vm1014 = vcmp.gt.f32.partialorder %v502, 0.5
    %vm1015 = vcmp.gt.f32.partialorder %v503, 0.5
    %vm1016 = vcmp.gt.f32.partialorder %v504, 0.5
    %vm1017 = vcmp.gt.f32.partialorder %v505, 0.5
    %vm1018 = vcmp.gt.f32.partialorder %v506, 0.5
    %vm1019 = vcmp.gt.f32.partialorder %v507, 0.5
    %vm1020 = vcmp.gt.f32.partialorder %v508, 0.5
    %vm1021 = vcmp.gt.f32.partialorder %v509, 0.5
    %vm1022 = vcmp.gt.f32.partialorder %v510, 0.5
    %vm1023 = vcmp.gt.f32.partialorder %v511, 0.5
    %vm1024 = vcmp.gt.f32.partialorder %v512, 0.5
    %vm1025 = vcmp.gt.f32.partialorder %v513, 0.5
    %vm1026 = vcmp.gt.f32.partialorder %v514, 0.5
    %vm1027 = vcmp.gt.f32.partialorder %v515, 0.5
    %vm1028 = vcmp.gt.f32.partialorder %v516, 0.5
    %vm1029 = vcmp.gt.f32.partialorder %v517, 0.5
    %vm1030 = vcmp.gt.f32.partialorder %v518, 0.5
    %vm1031 = vcmp.gt.f32.partialorder %v519, 0.5
    %vm1032 = vcmp.gt.f32.partialorder %v520, 0.5
    %vm1033 = vcmp.gt.f32.partialorder %v521, 0.5
    %vm1034 = vcmp.gt.f32.partialorder %v522, 0.5
    %vm1035 = vcmp.gt.f32.partialorder %v523, 0.5
    %vm1036 = vcmp.gt.f32.partialorder %v524, 0.5
    %vm1037 = vcmp.gt.f32.partialorder %v525, 0.5
    %vm1038 = vcmp.gt.f32.partialorder %v526, 0.5
    %vm1039 = vcmp.gt.f32.partialorder %v527, 0.5
    %vm1040 = vcmp.gt.f32.partialorder %v528, 0.5
    %vm1041 = vcmp.gt.f32.partialorder %v529, 0.5
    %vm1042 = vcmp.gt.f32.partialorder %v530, 0.5
    %vm1043 = vcmp.gt.f32.partialorder %v531, 0.5
    %vm1044 = vcmp.ge.f32.partialorder %v18, 0.0
    %vm1045 = vcmp.ge.f32.partialorder %v19, 0.0
    %vm1046 = vcmp.ge.f32.partialorder %v20, 0.0
    %vm1047 = vcmp.ge.f32.partialorder %v21, 0.0
    %vm1048 = vcmp.ge.f32.partialorder %v22, 0.0
    %vm1049 = vcmp.ge.f32.partialorder %v23, 0.0
    %vm1050 = vcmp.ge.f32.partialorder %v24, 0.0
    %vm1051 = vcmp.ge.f32.partialorder %v25, 0.0
    %vm1052 = vcmp.ge.f32.partialorder %v26, 0.0
    %vm1053 = vcmp.ge.f32.partialorder %v27, 0.0
    %vm1054 = vcmp.ge.f32.partialorder %v28, 0.0
    %vm1055 = vcmp.ge.f32.partialorder %v29, 0.0
    %vm1056 = vcmp.ge.f32.partialorder %v30, 0.0
    %vm1057 = vcmp.ge.f32.partialorder %v31, 0.0
    %vm1058 = vcmp.ge.f32.partialorder %v32, 0.0
    %vm1059 = vcmp.ge.f32.partialorder %v33, 0.0
    %vm1060 = vcmp.ge.f32.partialorder %v34, 0.0
    %vm1061 = vcmp.ge.f32.partialorder %v35, 0.0
    %vm1062 = vcmp.ge.f32.partialorder %v36, 0.0
    %vm1063 = vcmp.ge.f32.partialorder %v37, 0.0
    %vm1064 = vcmp.ge.f32.partialorder %v38, 0.0
    %vm1065 = vcmp.ge.f32.partialorder %v39, 0.0
    %vm1066 = vcmp.ge.f32.partialorder %v40, 0.0
    %vm1067 = vcmp.ge.f32.partialorder %v41, 0.0
    %vm1068 = vcmp.ge.f32.partialorder %v42, 0.0
    %vm1069 = vcmp.ge.f32.partialorder %v43, 0.0
    %vm1070 = vcmp.ge.f32.partialorder %v44, 0.0
    %vm1071 = vcmp.ge.f32.partialorder %v45, 0.0
    %vm1072 = vcmp.ge.f32.partialorder %v46, 0.0
    %vm1073 = vcmp.ge.f32.partialorder %v47, 0.0
    %vm1074 = vcmp.ge.f32.partialorder %v48, 0.0
    %vm1075 = vcmp.ge.f32.partialorder %v49, 0.0
    %vm1076 = vcmp.ge.f32.partialorder %v50, 0.0
    %vm1077 = vcmp.ge.f32.partialorder %v51, 0.0
    %vm1078 = vcmp.ge.f32.partialorder %v52, 0.0
    %vm1079 = vcmp.ge.f32.partialorder %v53, 0.0
    %vm1080 = vcmp.ge.f32.partialorder %v54, 0.0
    %vm1081 = vcmp.ge.f32.partialorder %v55, 0.0
    %vm1082 = vcmp.ge.f32.partialorder %v56, 0.0
    %vm1083 = vcmp.ge.f32.partialorder %v57, 0.0
    %vm1084 = vcmp.ge.f32.partialorder %v58, 0.0
    %vm1085 = vcmp.ge.f32.partialorder %v59, 0.0
    %vm1086 = vcmp.ge.f32.partialorder %v60, 0.0
    %vm1087 = vcmp.ge.f32.partialorder %v61, 0.0
    %vm1088 = vcmp.ge.f32.partialorder %v62, 0.0
    %vm1089 = vcmp.ge.f32.partialorder %v63, 0.0
    %vm1090 = vcmp.ge.f32.partialorder %v64, 0.0
    %vm1091 = vcmp.ge.f32.partialorder %v65, 0.0
    %vm1092 = vcmp.ge.f32.partialorder %v66, 0.0
    %vm1093 = vcmp.ge.f32.partialorder %v67, 0.0
    %vm1094 = vcmp.ge.f32.partialorder %v68, 0.0
    %vm1095 = vcmp.ge.f32.partialorder %v69, 0.0
    %vm1096 = vcmp.ge.f32.partialorder %v70, 0.0
    %vm1097 = vcmp.ge.f32.partialorder %v71, 0.0
    %vm1098 = vcmp.ge.f32.partialorder %v72, 0.0
    %vm1099 = vcmp.ge.f32.partialorder %v73, 0.0
    %vm1100 = vcmp.ge.f32.partialorder %v74, 0.0
    %vm1101 = vcmp.ge.f32.partialorder %v75, 0.0
    %vm1102 = vcmp.ge.f32.partialorder %v76, 0.0
    %vm1103 = vcmp.ge.f32.partialorder %v77, 0.0
    %vm1104 = vcmp.ge.f32.partialorder %v78, 0.0
    %vm1105 = vcmp.ge.f32.partialorder %v79, 0.0
    %vm1106 = vcmp.ge.f32.partialorder %v80, 0.0
    %vm1107 = vcmp.ge.f32.partialorder %v81, 0.0
    %vm1108 = vmxor %vm980, %vm1044
    %vm1109 = vmxor %vm981, %vm1045
    %vm1110 = vmxor %vm982, %vm1046
    %vm1111 = vmxor %vm983, %vm1047
    %vm1112 = vmxor %vm984, %vm1048
    %vm1113 = vmxor %vm985, %vm1049
    %vm1114 = vmxor %vm986, %vm1050
    %vm1115 = vmxor %vm987, %vm1051
    %vm1116 = vmxor %vm988, %vm1052
    %vm1117 = vmxor %vm989, %vm1053
    %vm1118 = vmxor %vm990, %vm1054
    %vm1119 = vmxor %vm991, %vm1055
    %vm1120 = vmxor %vm992, %vm1056
    %vm1121 = vmxor %vm993, %vm1057
    %vm1122 = vmxor %vm994, %vm1058
    %vm1123 = vmxor %vm995, %vm1059
    %vm1124 = vmxor %vm996, %vm1060
    %vm1125 = vmxor %vm997, %vm1061
    %vm1126 = vmxor %vm998, %vm1062
    %vm1127 = vmxor %vm999, %vm1063
    %vm1128 = vmxor %vm1000, %vm1064
    %vm1129 = vmxor %vm1001, %vm1065
    %vm1130 = vmxor %vm1002, %vm1066
    %vm1131 = vmxor %vm1003, %vm1067
    %vm1132 = vmxor %vm1004, %vm1068
    %vm1133 = vmxor %vm1005, %vm1069
    %vm1134 = vmxor %vm1006, %vm1070
    %vm1135 = vmxor %vm1007, %vm1071
    %vm1136 = vmxor %vm1008, %vm1072
    %vm1137 = vmxor %vm1009, %vm1073
    %vm1138 = vmxor %vm1010, %vm1074
    %vm1139 = vmxor %vm1011, %vm1075
    %vm1140 = vmxor %vm1012, %vm1076
    %vm1141 = vmxor %vm1013, %vm1077
    %vm1142 = vmxor %vm1014, %vm1078
    %vm1143 = vmxor %vm1015, %vm1079
    %vm1144 = vmxor %vm1016, %vm1080
    %vm1145 = vmxor %vm1017, %vm1081
    %vm1146 = vmxor %vm1018, %vm1082
    %vm1147 = vmxor %vm1019, %vm1083
    %vm1148 = vmxor %vm1020, %vm1084
    %vm1149 = vmxor %vm1021, %vm1085
    %vm1150 = vmxor %vm1022, %vm1086
    %vm1151 = vmxor %vm1023, %vm1087
    %vm1152 = vmxor %vm1024, %vm1088
    %vm1153 = vmxor %vm1025, %vm1089
    %vm1154 = vmxor %vm1026, %vm1090
    %vm1155 = vmxor %vm1027, %vm1091
    %vm1156 = vmxor %vm1028, %vm1092
    %vm1157 = vmxor %vm1029, %vm1093
    %vm1158 = vmxor %vm1030, %vm1094
    %vm1159 = vmxor %vm1031, %vm1095
    %vm1160 = vmxor %vm1032, %vm1096
    %vm1161 = vmxor %vm1033, %vm1097
    %vm1162 = vmxor %vm1034, %vm1098
    %vm1163 = vmxor %vm1035, %vm1099
    %vm1164 = vmxor %vm1036, %vm1100
    %vm1165 = vmxor %vm1037, %vm1101
    %vm1166 = vmxor %vm1038, %vm1102
    %vm1167 = vmxor %vm1039, %vm1103
    %vm1168 = vmxor %vm1040, %vm1104
    %vm1169 = vmxor %vm1041, %vm1105
    %vm1170 = vmxor %vm1042, %vm1106
    %vm1171 = vmxor %vm1043, %vm1107
    %vm1172 = vmxor %vm1108, 1
    %vm1173 = vmxor %vm1109, 1
    %vm1174 = vmxor %vm1110, 1
    %vm1175 = vmxor %vm1111, 1
    %vm1176 = vmxor %vm1112, 1
    %vm1177 = vmxor %vm1113, 1
    %vm1178 = vmxor %vm1114, 1
    %vm1179 = vmxor %vm1115, 1
    %vm1180 = vmxor %vm1116, 1
    %vm1181 = vmxor %vm1117, 1
    %vm1182 = vmxor %vm1118, 1
    %vm1183 = vmxor %vm1119, 1
    %vm1184 = vmxor %vm1120, 1
    %vm1185 = vmxor %vm1121, 1
    %vm1186 = vmxor %vm1122, 1
    %vm1187 = vmxor %vm1123, 1
    %vm1188 = vmxor %vm1124, 1
    %vm1189 = vmxor %vm1125, 1
    %vm1190 = vmxor %vm1126, 1
    %vm1191 = vmxor %vm1127, 1
    %vm1192 = vmxor %vm1128, 1
    %vm1193 = vmxor %vm1129, 1
    %vm1194 = vmxor %vm1130, 1
    %vm1195 = vmxor %vm1131, 1
    %vm1196 = vmxor %vm1132, 1
    %vm1197 = vmxor %vm1133, 1
    %vm1198 = vmxor %vm1134, 1
    %vm1199 = vmxor %vm1135, 1
    %vm1200 = vmxor %vm1136, 1
    %vm1201 = vmxor %vm1137, 1
    %vm1202 = vmxor %vm1138, 1
    %vm1203 = vmxor %vm1139, 1
    %vm1204 = vmxor %vm1140, 1
    %vm1205 = vmxor %vm1141, 1
    %vm1206 = vmxor %vm1142, 1
    %vm1207 = vmxor %vm1143, 1
    %vm1208 = vmxor %vm1144, 1
    %vm1209 = vmxor %vm1145, 1
    %vm1210 = vmxor %vm1146, 1
    %vm1211 = vmxor %vm1147, 1
    %vm1212 = vmxor %vm1148, 1
    %vm1213 = vmxor %vm1149, 1
    %vm1214 = vmxor %vm1150, 1
    %vm1215 = vmxor %vm1151, 1
    %vm1216 = vmxor %vm1152, 1
    %vm1217 = vmxor %vm1153, 1
    %vm1218 = vmxor %vm1154, 1
    %vm1219 = vmxor %vm1155, 1
    %vm1220 = vmxor %vm1156, 1
    %vm1221 = vmxor %vm1157, 1
    %vm1222 = vmxor %vm1158, 1
    %vm1223 = vmxor %vm1159, 1
    %vm1224 = vmxor %vm1160, 1
    %vm1225 = vmxor %vm1161, 1
    %vm1226 = vmxor %vm1162, 1
    %vm1227 = vmxor %vm1163, 1
    %vm1228 = vmxor %vm1164, 1
    %vm1229 = vmxor %vm1165, 1
    %vm1230 = vmxor %vm1166, 1
    %vm1231 = vmxor %vm1167, 1
    %vm1232 = vmxor %vm1168, 1
    %vm1233 = vmxor %vm1169, 1
    %vm1234 = vmxor %vm1170, 1
    %vm1235 = vmxor %vm1171, 1
    %v1236 = vsel %vm1172, %v661, 1.0
    %v1237 = vsel %vm1173, %v663, 1.0
    %v1238 = vsel %vm1174, %v665, 1.0
    %v1239 = vsel %vm1175, %v667, 1.0
    %v1240 = vsel %vm1176, %v669, 1.0
    %v1241 = vsel %vm1177, %v671, 1.0
    %v1242 = vsel %vm1178, %v673, 1.0
    %v1243 = vsel %vm1179, %v675, 1.0
    %v1244 = vsel %vm1180, %v677, 1.0
    %v1245 = vsel %vm1181, %v679, 1.0
    %v1246 = vsel %vm1182, %v681, 1.0
    %v1247 = vsel %vm1183, %v683, 1.0
    %v1248 = vsel %vm1184, %v685, 1.0
    %v1249 = vsel %vm1185, %v687, 1.0
    %v1250 = vsel %vm1186, %v689, 1.0
    %v1251 = vsel %vm1187, %v691, 1.0
    %v1252 = vsel %vm1188, %v693, 1.0
    %v1253 = vsel %vm1189, %v695, 1.0
    %v1254 = vsel %vm1190, %v697, 1.0
    %v1255 = vsel %vm1191, %v699, 1.0
    %v1256 = vsel %vm1192, %v701, 1.0
    %v1257 = vsel %vm1193, %v703, 1.0
    %v1258 = vsel %vm1194, %v705, 1.0
    %v1259 = vsel %vm1195, %v707, 1.0
    %v1260 = vsel %vm1196, %v709, 1.0
    %v1261 = vsel %vm1197, %v711, 1.0
    %v1262 = vsel %vm1198, %v713, 1.0
    %v1263 = vsel %vm1199, %v715, 1.0
    %v1264 = vsel %vm1200, %v717, 1.0
    %v1265 = vsel %vm1201, %v719, 1.0
    %v1266 = vsel %vm1202, %v721, 1.0
    %v1267 = vsel %vm1203, %v723, 1.0
    %v1268 = vsel %vm1204, %v725, 1.0
    %v1269 = vsel %vm1205, %v727, 1.0
    %v1270 = vsel %vm1206, %v729, 1.0
    %v1271 = vsel %vm1207, %v731, 1.0
    %v1272 = vsel %vm1208, %v733, 1.0
    %v1273 = vsel %vm1209, %v735, 1.0
    %v1274 = vsel %vm1210, %v737, 1.0
    %v1275 = vsel %vm1211, %v739, 1.0
    %v1276 = vsel %vm1212, %v741, 1.0
    %v1277 = vsel %vm1213, %v743, 1.0
    %v1278 = vsel %vm1214, %v745, 1.0
    %v1279 = vsel %vm1215, %v747, 1.0
    %v1280 = vsel %vm1216, %v749, 1.0
    %v1281 = vsel %vm1217, %v751, 1.0
    %v1282 = vsel %vm1218, %v753, 1.0
    %v1283 = vsel %vm1219, %v755, 1.0
    %v1284 = vsel %vm1220, %v757, 1.0
    %v1285 = vsel %vm1221, %v759, 1.0
    %v1286 = vsel %vm1222, %v761, 1.0
    %v1287 = vsel %vm1223, %v763, 1.0
    %v1288 = vsel %vm1224, %v765, 1.0
    %v1289 = vsel %vm1225, %v767, 1.0
    %v1290 = vsel %vm1226, %v769, 1.0
    %v1291 = vsel %vm1227, %v771, 1.0
    %v1292 = vsel %vm1228, %v773, 1.0
    %v1293 = vsel %vm1229, %v775, 1.0
    %v1294 = vsel %vm1230, %v777, 1.0
    %v1295 = vsel %vm1231, %v779, 1.0
    %v1296 = vsel %vm1232, %v781, 1.0
    %v1297 = vsel %vm1233, %v783, 1.0
    %v1298 = vsel %vm1234, %v785, 1.0
    %v1299 = vsel %vm1235, %v787, 1.0
    %v1300 = vmul.f32 %v1236, %v853
    %v1301 = vmul.f32 %v1237, %v855
    %v1302 = vmul.f32 %v1238, %v857
    %v1303 = vmul.f32 %v1239, %v859
    %v1304 = vmul.f32 %v1240, %v861
    %v1305 = vmul.f32 %v1241, %v863
    %v1306 = vmul.f32 %v1242, %v865
    %v1307 = vmul.f32 %v1243, %v867
    %v1308 = vmul.f32 %v1244, %v869
    %v1309 = vmul.f32 %v1245, %v871
    %v1310 = vmul.f32 %v1246, %v873
    %v1311 = vmul.f32 %v1247, %v875
    %v1312 = vmul.f32 %v1248, %v877
    %v1313 = vmul.f32 %v1249, %v879
    %v1314 = vmul.f32 %v1250, %v881
    %v1315 = vmul.f32 %v1251, %v883
    %v1316 = vmul.f32 %v1252, %v885
    %v1317 = vmul.f32 %v1253, %v887
    %v1318 = vmul.f32 %v1254, %v889
    %v1319 = vmul.f32 %v1255, %v891
    %v1320 = vmul.f32 %v1256, %v893
    %v1321 = vmul.f32 %v1257, %v895
    %v1322 = vmul.f32 %v1258, %v897
    %v1323 = vmul.f32 %v1259, %v899
    %v1324 = vmul.f32 %v1260, %v901
    %v1325 = vmul.f32 %v1261, %v903
    %v1326 = vmul.f32 %v1262, %v905
    %v1327 = vmul.f32 %v1263, %v907
    %v1328 = vmul.f32 %v1264, %v909
    %v1329 = vmul.f32 %v1265, %v911
    %v1330 = vmul.f32 %v1266, %v913
    %v1331 = vmul.f32 %v1267, %v915
    %v1332 = vmul.f32 %v1268, %v917
    %v1333 = vmul.f32 %v1269, %v919
    %v1334 = vmul.f32 %v1270, %v921
    %v1335 = vmul.f32 %v1271, %v923
    %v1336 = vmul.f32 %v1272, %v925
    %v1337 = vmul.f32 %v1273, %v927
    %v1338 = vmul.f32 %v1274, %v929
    %v1339 = vmul.f32 %v1275, %v931
    %v1340 = vmul.f32 %v1276, %v933
    %v1341 = vmul.f32 %v1277, %v935
    %v1342 = vmul.f32 %v1278, %v937
    %v1343 = vmul.f32 %v1279, %v939
    %v1344 = vmul.f32 %v1280, %v941
    %v1345 = vmul.f32 %v1281, %v943
    %v1346 = vmul.f32 %v1282, %v945
    %v1347 = vmul.f32 %v1283, %v947
    %v1348 = vmul.f32 %v1284, %v949
    %v1349 = vmul.f32 %v1285, %v951
    %v1350 = vmul.f32 %v1286, %v953
    %v1351 = vmul.f32 %v1287, %v955
    %v1352 = vmul.f32 %v1288, %v957
    %v1353 = vmul.f32 %v1289, %v959
    %v1354 = vmul.f32 %v1290, %v961
    %v1355 = vmul.f32 %v1291, %v963
    %v1356 = vmul.f32 %v1292, %v965
    %v1357 = vmul.f32 %v1293, %v967
    %v1358 = vmul.f32 %v1294, %v969
    %v1359 = vmul.f32 %v1295, %v971
    %v1360 = vmul.f32 %v1296, %v973
    %v1361 = vmul.f32 %v1297, %v975
    %v1362 = vmul.f32 %v1298, %v977
    %v1363 = vmul.f32 %v1299, %v979
    %v1364 = vmax.f32 %v18, 0.0
    %v1365 = vmax.f32 %v19, 0.0
    %v1366 = vmax.f32 %v20, 0.0
    %v1367 = vmax.f32 %v21, 0.0
    %v1368 = vmax.f32 %v22, 0.0
    %v1369 = vmax.f32 %v23, 0.0
    %v1370 = vmax.f32 %v24, 0.0
    %v1371 = vmax.f32 %v25, 0.0
    %v1372 = vmax.f32 %v26, 0.0
    %v1373 = vmax.f32 %v27, 0.0
    %v1374 = vmax.f32 %v28, 0.0
    %v1375 = vmax.f32 %v29, 0.0
    %v1376 = vmax.f32 %v30, 0.0
    %v1377 = vmax.f32 %v31, 0.0
    %v1378 = vmax.f32 %v32, 0.0
    %v1379 = vmax.f32 %v33, 0.0
    %v1380 = vmax.f32 %v34, 0.0
    %v1381 = vmax.f32 %v35, 0.0
    %v1382 = vmax.f32 %v36, 0.0
    %v1383 = vmax.f32 %v37, 0.0
    %v1384 = vmax.f32 %v38, 0.0
    %v1385 = vmax.f32 %v39, 0.0
    %v1386 = vmax.f32 %v40, 0.0
    %v1387 = vmax.f32 %v41, 0.0
    %v1388 = vmax.f32 %v42, 0.0
    %v1389 = vmax.f32 %v43, 0.0
    %v1390 = vmax.f32 %v44, 0.0
    %v1391 = vmax.f32 %v45, 0.0
    %v1392 = vmax.f32 %v46, 0.0
    %v1393 = vmax.f32 %v47, 0.0
    %v1394 = vmax.f32 %v48, 0.0
    %v1395 = vmax.f32 %v49, 0.0
    %v1396 = vmax.f32 %v50, 0.0
    %v1397 = vmax.f32 %v51, 0.0
    %v1398 = vmax.f32 %v52, 0.0
    %v1399 = vmax.f32 %v53, 0.0
    %v1400 = vmax.f32 %v54, 0.0
    %v1401 = vmax.f32 %v55, 0.0
    %v1402 = vmax.f32 %v56, 0.0
    %v1403 = vmax.f32 %v57, 0.0
    %v1404 = vmax.f32 %v58, 0.0
    %v1405 = vmax.f32 %v59, 0.0
    %v1406 = vmax.f32 %v60, 0.0
    %v1407 = vmax.f32 %v61, 0.0
    %v1408 = vmax.f32 %v62, 0.0
    %v1409 = vmax.f32 %v63, 0.0
    %v1410 = vmax.f32 %v64, 0.0
    %v1411 = vmax.f32 %v65, 0.0
    %v1412 = vmax.f32 %v66, 0.0
    %v1413 = vmax.f32 %v67, 0.0
    %v1414 = vmax.f32 %v68, 0.0
    %v1415 = vmax.f32 %v69, 0.0
    %v1416 = vmax.f32 %v70, 0.0
    %v1417 = vmax.f32 %v71, 0.0
    %v1418 = vmax.f32 %v72, 0.0
    %v1419 = vmax.f32 %v73, 0.0
    %v1420 = vmax.f32 %v74, 0.0
    %v1421 = vmax.f32 %v75, 0.0
    %v1422 = vmax.f32 %v76, 0.0
    %v1423 = vmax.f32 %v77, 0.0
    %v1424 = vmax.f32 %v78, 0.0
    %v1425 = vmax.f32 %v79, 0.0
    %v1426 = vmax.f32 %v80, 0.0
    %v1427 = vmax.f32 %v81, 0.0
    %v1428 = vmul.f32 %v18, %v468
    %v1429 = vmul.f32 %v19, %v469
    %v1430 = vmul.f32 %v20, %v470
    %v1431 = vmul.f32 %v21, %v471
    %v1432 = vmul.f32 %v22, %v472
    %v1433 = vmul.f32 %v23, %v473
    %v1434 = vmul.f32 %v24, %v474
    %v1435 = vmul.f32 %v25, %v475
    %v1436 = vmul.f32 %v26, %v476
    %v1437 = vmul.f32 %v27, %v477
    %v1438 = vmul.f32 %v28, %v478
    %v1439 = vmul.f32 %v29, %v479
    %v1440 = vmul.f32 %v30, %v480
    %v1441 = vmul.f32 %v31, %v481
    %v1442 = vmul.f32 %v32, %v482
    %v1443 = vmul.f32 %v33, %v483
    %v1444 = vmul.f32 %v34, %v484
    %v1445 = vmul.f32 %v35, %v485
    %v1446 = vmul.f32 %v36, %v486
    %v1447 = vmul.f32 %v37, %v487
    %v1448 = vmul.f32 %v38, %v488
    %v1449 = vmul.f32 %v39, %v489
    %v1450 = vmul.f32 %v40, %v490
    %v1451 = vmul.f32 %v41, %v491
    %v1452 = vmul.f32 %v42, %v492
    %v1453 = vmul.f32 %v43, %v493
    %v1454 = vmul.f32 %v44, %v494
    %v1455 = vmul.f32 %v45, %v495
    %v1456 = vmul.f32 %v46, %v496
    %v1457 = vmul.f32 %v47, %v497
    %v1458 = vmul.f32 %v48, %v498
    %v1459 = vmul.f32 %v49, %v499
    %v1460 = vmul.f32 %v50, %v500
    %v1461 = vmul.f32 %v51, %v501
    %v1462 = vmul.f32 %v52, %v502
    %v1463 = vmul.f32 %v53, %v503
    %v1464 = vmul.f32 %v54, %v504
    %v1465 = vmul.f32 %v55, %v505
    %v1466 = vmul.f32 %v56, %v506
    %v1467 = vmul.f32 %v57, %v507
    %v1468 = vmul.f32 %v58, %v508
    %v1469 = vmul.f32 %v59, %v509
    %v1470 = vmul.f32 %v60, %v510
    %v1471 = vmul.f32 %v61, %v511
    %v1472 = vmul.f32 %v62, %v512
    %v1473 = vmul.f32 %v63, %v513
    %v1474 = vmul.f32 %v64, %v514
    %v1475 = vmul.f32 %v65, %v515
    %v1476 = vmul.f32 %v66, %v516
    %v1477 = vmul.f32 %v67, %v517
    %v1478 = vmul.f32 %v68, %v518
    %v1479 = vmul.f32 %v69, %v519
    %v1480 = vmul.f32 %v70, %v520
    %v1481 = vmul.f32 %v71, %v521
    %v1482 = vmul.f32 %v72, %v522
    %v1483 = vmul.f32 %v73, %v523
    %v1484 = vmul.f32 %v74, %v524
    %v1485 = vmul.f32 %v75, %v525
    %v1486 = vmul.f32 %v76, %v526
    %v1487 = vmul.f32 %v77, %v527
    %v1488 = vmul.f32 %v78, %v528
    %v1489 = vmul.f32 %v79, %v529
    %v1490 = vmul.f32 %v80, %v530
    %v1491 = vmul.f32 %v81, %v531
    %v1492 = vsub.f32 %v1364, %v1428
    %v1493 = vsub.f32 %v1365, %v1429
    %v1494 = vsub.f32 %v1366, %v1430
    %v1495 = vsub.f32 %v1367, %v1431
    %v1496 = vsub.f32 %v1368, %v1432
    %v1497 = vsub.f32 %v1369, %v1433
    %v1498 = vsub.f32 %v1370, %v1434
    %v1499 = vsub.f32 %v1371, %v1435
    %v1500 = vsub.f32 %v1372, %v1436
    %v1501 = vsub.f32 %v1373, %v1437
    %v1502 = vsub.f32 %v1374, %v1438
    %v1503 = vsub.f32 %v1375, %v1439
    %v1504 = vsub.f32 %v1376, %v1440
    %v1505 = vsub.f32 %v1377, %v1441
    %v1506 = vsub.f32 %v1378, %v1442
    %v1507 = vsub.f32 %v1379, %v1443
    %v1508 = vsub.f32 %v1380, %v1444
    %v1509 = vsub.f32 %v1381, %v1445
    %v1510 = vsub.f32 %v1382, %v1446
    %v1511 = vsub.f32 %v1383, %v1447
    %v1512 = vsub.f32 %v1384, %v1448
    %v1513 = vsub.f32 %v1385, %v1449
    %v1514 = vsub.f32 %v1386, %v1450
    %v1515 = vsub.f32 %v1387, %v1451
    %v1516 = vsub.f32 %v1388, %v1452
    %v1517 = vsub.f32 %v1389, %v1453
    %v1518 = vsub.f32 %v1390, %v1454
    %v1519 = vsub.f32 %v1391, %v1455
    %v1520 = vsub.f32 %v1392, %v1456
    %v1521 = vsub.f32 %v1393, %v1457
    %v1522 = vsub.f32 %v1394, %v1458
    %v1523 = vsub.f32 %v1395, %v1459
    %v1524 = vsub.f32 %v1396, %v1460
    %v1525 = vsub.f32 %v1397, %v1461
    %v1526 = vsub.f32 %v1398, %v1462
    %v1527 = vsub.f32 %v1399, %v1463
    %v1528 = vsub.f32 %v1400, %v1464
    %v1529 = vsub.f32 %v1401, %v1465
    %v1530 = vsub.f32 %v1402, %v1466
    %v1531 = vsub.f32 %v1403, %v1467
    %v1532 = vsub.f32 %v1404, %v1468
    %v1533 = vsub.f32 %v1405, %v1469
    %v1534 = vsub.f32 %v1406, %v1470
    %v1535 = vsub.f32 %v1407, %v1471
    %v1536 = vsub.f32 %v1408, %v1472
    %v1537 = vsub.f32 %v1409, %v1473
    %v1538 = vsub.f32 %v1410, %v1474
    %v1539 = vsub.f32 %v1411, %v1475
    %v1540 = vsub.f32 %v1412, %v1476
    %v1541 = vsub.f32 %v1413, %v1477
    %v1542 = vsub.f32 %v1414, %v1478
    %v1543 = vsub.f32 %v1415, %v1479
    %v1544 = vsub.f32 %v1416, %v1480
    %v1545 = vsub.f32 %v1417, %v1481
    %v1546 = vsub.f32 %v1418, %v1482
    %v1547 = vsub.f32 %v1419, %v1483
    %v1548 = vsub.f32 %v1420, %v1484
    %v1549 = vsub.f32 %v1421, %v1485
    %v1550 = vsub.f32 %v1422, %v1486
    %v1551 = vsub.f32 %v1423, %v1487
    %v1552 = vsub.f32 %v1424, %v1488
    %v1553 = vsub.f32 %v1425, %v1489
    %v1554 = vsub.f32 %v1426, %v1490
    %v1555 = vsub.f32 %v1427, %v1491
    %v1556 = vlog2.pop %v788
    %v1557 = vmul.f32 %v1556, 0.6931472
    %v1558 = vlog2.pop %v789
    %v1559 = vmul.f32 %v1558, 0.6931472
    %v1560 = vlog2.pop %v790
    %v1561 = vmul.f32 %v1560, 0.6931472
    %v1562 = vlog2.pop %v791
    %v1563 = vmul.f32 %v1562, 0.6931472
    %v1564 = vlog2.pop %v792
    %v1565 = vmul.f32 %v1564, 0.6931472
    %v1566 = vlog2.pop %v793
    %v1567 = vmul.f32 %v1566, 0.6931472
    %v1568 = vlog2.pop %v794
    %v1569 = vmul.f32 %v1568, 0.6931472
    %v1570 = vlog2.pop %v795
    %v1571 = vmul.f32 %v1570, 0.6931472
    %v1572 = vlog2.pop %v796
    %v1573 = vmul.f32 %v1572, 0.6931472
    %v1574 = vlog2.pop %v797
    %v1575 = vmul.f32 %v1574, 0.6931472
    %v1576 = vlog2.pop %v798
    %v1577 = vmul.f32 %v1576, 0.6931472
    %v1578 = vlog2.pop %v799
    %v1579 = vmul.f32 %v1578, 0.6931472
    %v1580 = vlog2.pop %v800
    %v1581 = vmul.f32 %v1580, 0.6931472
    %v1582 = vlog2.pop %v801
    %v1583 = vmul.f32 %v1582, 0.6931472
    %v1584 = vlog2.pop %v802
    %v1585 = vmul.f32 %v1584, 0.6931472
    %v1586 = vlog2.pop %v803
    %v1587 = vmul.f32 %v1586, 0.6931472
    %v1588 = vlog2.pop %v804
    %v1589 = vmul.f32 %v1588, 0.6931472
    %v1590 = vlog2.pop %v805
    %v1591 = vmul.f32 %v1590, 0.6931472
    %v1592 = vlog2.pop %v806
    %v1593 = vmul.f32 %v1592, 0.6931472
    %v1594 = vlog2.pop %v807
    %v1595 = vmul.f32 %v1594, 0.6931472
    %v1596 = vlog2.pop %v808
    %v1597 = vmul.f32 %v1596, 0.6931472
    %v1598 = vlog2.pop %v809
    %v1599 = vmul.f32 %v1598, 0.6931472
    %v1600 = vlog2.pop %v810
    %v1601 = vmul.f32 %v1600, 0.6931472
    %v1602 = vlog2.pop %v811
    %v1603 = vmul.f32 %v1602, 0.6931472
    %v1604 = vlog2.pop %v812
    %v1605 = vmul.f32 %v1604, 0.6931472
    %v1606 = vlog2.pop %v813
    %v1607 = vmul.f32 %v1606, 0.6931472
    %v1608 = vlog2.pop %v814
    %v1609 = vmul.f32 %v1608, 0.6931472
    %v1610 = vlog2.pop %v815
    %v1611 = vmul.f32 %v1610, 0.6931472
    %v1612 = vlog2.pop %v816
    %v1613 = vmul.f32 %v1612, 0.6931472
    %v1614 = vlog2.pop %v817
    %v1615 = vmul.f32 %v1614, 0.6931472
    %v1616 = vlog2.pop %v818
    %v1617 = vmul.f32 %v1616, 0.6931472
    %v1618 = vlog2.pop %v819
    %v1619 = vmul.f32 %v1618, 0.6931472
    %v1620 = vlog2.pop %v820
    %v1621 = vmul.f32 %v1620, 0.6931472
    %v1622 = vlog2.pop %v821
    %v1623 = vmul.f32 %v1622, 0.6931472
    %v1624 = vlog2.pop %v822
    %v1625 = vmul.f32 %v1624, 0.6931472
    %v1626 = vlog2.pop %v823
    %v1627 = vmul.f32 %v1626, 0.6931472
    %v1628 = vlog2.pop %v824
    %v1629 = vmul.f32 %v1628, 0.6931472
    %v1630 = vlog2.pop %v825
    %v1631 = vmul.f32 %v1630, 0.6931472
    %v1632 = vlog2.pop %v826
    %v1633 = vmul.f32 %v1632, 0.6931472
    %v1634 = vlog2.pop %v827
    %v1635 = vmul.f32 %v1634, 0.6931472
    %v1636 = vlog2.pop %v828
    %v1637 = vmul.f32 %v1636, 0.6931472
    %v1638 = vlog2.pop %v829
    %v1639 = vmul.f32 %v1638, 0.6931472
    %v1640 = vlog2.pop %v830
    %v1641 = vmul.f32 %v1640, 0.6931472
    %v1642 = vlog2.pop %v831
    %v1643 = vmul.f32 %v1642, 0.6931472
    %v1644 = vlog2.pop %v832
    %v1645 = vmul.f32 %v1644, 0.6931472
    %v1646 = vlog2.pop %v833
    %v1647 = vmul.f32 %v1646, 0.6931472
    %v1648 = vlog2.pop %v834
    %v1649 = vmul.f32 %v1648, 0.6931472
    %v1650 = vlog2.pop %v835
    %v1651 = vmul.f32 %v1650, 0.6931472
    %v1652 = vlog2.pop %v836
    %v1653 = vmul.f32 %v1652, 0.6931472
    %v1654 = vlog2.pop %v837
    %v1655 = vmul.f32 %v1654, 0.6931472
    %v1656 = vlog2.pop %v838
    %v1657 = vmul.f32 %v1656, 0.6931472
    %v1658 = vlog2.pop %v839
    %v1659 = vmul.f32 %v1658, 0.6931472
    %v1660 = vlog2.pop %v840
    %v1661 = vmul.f32 %v1660, 0.6931472
    %v1662 = vlog2.pop %v841
    %v1663 = vmul.f32 %v1662, 0.6931472
    %v1664 = vlog2.pop %v842
    %v1665 = vmul.f32 %v1664, 0.6931472
    %v1666 = vlog2.pop %v843
    %v1667 = vmul.f32 %v1666, 0.6931472
    %v1668 = vlog2.pop %v844
    %v1669 = vmul.f32 %v1668, 0.6931472
    %v1670 = vlog2.pop %v845
    %v1671 = vmul.f32 %v1670, 0.6931472
    %v1672 = vlog2.pop %v846
    %v1673 = vmul.f32 %v1672, 0.6931472
    %v1674 = vlog2.pop %v847
    %v1675 = vmul.f32 %v1674, 0.6931472
    %v1676 = vlog2.pop %v848
    %v1677 = vmul.f32 %v1676, 0.6931472
    %v1678 = vlog2.pop %v849
    %v1679 = vmul.f32 %v1678, 0.6931472
    %v1680 = vlog2.pop %v850
    %v1681 = vmul.f32 %v1680, 0.6931472
    %v1682 = vlog2.pop %v851
    %v1683 = vmul.f32 %v1682, 0.6931472
    %v1684 = vadd.f32 %v1492, %v1557
    %v1685 = vadd.f32 %v1493, %v1559
    %v1686 = vadd.f32 %v1494, %v1561
    %v1687 = vadd.f32 %v1495, %v1563
    %v1688 = vadd.f32 %v1496, %v1565
    %v1689 = vadd.f32 %v1497, %v1567
    %v1690 = vadd.f32 %v1498, %v1569
    %v1691 = vadd.f32 %v1499, %v1571
    %v1692 = vadd.f32 %v1500, %v1573
    %v1693 = vadd.f32 %v1501, %v1575
    %v1694 = vadd.f32 %v1502, %v1577
    %v1695 = vadd.f32 %v1503, %v1579
    %v1696 = vadd.f32 %v1504, %v1581
    %v1697 = vadd.f32 %v1505, %v1583
    %v1698 = vadd.f32 %v1506, %v1585
    %v1699 = vadd.f32 %v1507, %v1587
    %v1700 = vadd.f32 %v1508, %v1589
    %v1701 = vadd.f32 %v1509, %v1591
    %v1702 = vadd.f32 %v1510, %v1593
    %v1703 = vadd.f32 %v1511, %v1595
    %v1704 = vadd.f32 %v1512, %v1597
    %v1705 = vadd.f32 %v1513, %v1599
    %v1706 = vadd.f32 %v1514, %v1601
    %v1707 = vadd.f32 %v1515, %v1603
    %v1708 = vadd.f32 %v1516, %v1605
    %v1709 = vadd.f32 %v1517, %v1607
    %v1710 = vadd.f32 %v1518, %v1609
    %v1711 = vadd.f32 %v1519, %v1611
    %v1712 = vadd.f32 %v1520, %v1613
    %v1713 = vadd.f32 %v1521, %v1615
    %v1714 = vadd.f32 %v1522, %v1617
    %v1715 = vadd.f32 %v1523, %v1619
    %v1716 = vadd.f32 %v1524, %v1621
    %v1717 = vadd.f32 %v1525, %v1623
    %v1718 = vadd.f32 %v1526, %v1625
    %v1719 = vadd.f32 %v1527, %v1627
    %v1720 = vadd.f32 %v1528, %v1629
    %v1721 = vadd.f32 %v1529, %v1631
    %v1722 = vadd.f32 %v1530, %v1633
    %v1723 = vadd.f32 %v1531, %v1635
    %v1724 = vadd.f32 %v1532, %v1637
    %v1725 = vadd.f32 %v1533, %v1639
    %v1726 = vadd.f32 %v1534, %v1641
    %v1727 = vadd.f32 %v1535, %v1643
    %v1728 = vadd.f32 %v1536, %v1645
    %v1729 = vadd.f32 %v1537, %v1647
    %v1730 = vadd.f32 %v1538, %v1649
    %v1731 = vadd.f32 %v1539, %v1651
    %v1732 = vadd.f32 %v1540, %v1653
    %v1733 = vadd.f32 %v1541, %v1655
    %v1734 = vadd.f32 %v1542, %v1657
    %v1735 = vadd.f32 %v1543, %v1659
    %v1736 = vadd.f32 %v1544, %v1661
    %v1737 = vadd.f32 %v1545, %v1663
    %v1738 = vadd.f32 %v1546, %v1665
    %v1739 = vadd.f32 %v1547, %v1667
    %v1740 = vadd.f32 %v1548, %v1669
    %v1741 = vadd.f32 %v1549, %v1671
    %v1742 = vadd.f32 %v1550, %v1673
    %v1743 = vadd.f32 %v1551, %v1675
    %v1744 = vadd.f32 %v1552, %v1677
    %v1745 = vadd.f32 %v1553, %v1679
    %v1746 = vadd.f32 %v1554, %v1681
    %v1747 = vadd.f32 %v1555, %v1683
    %v1748 = vmul.f32 %v468, -0.5
    %v1749 = vmul.f32 %v469, -0.5
    %v1750 = vmul.f32 %v470, -0.5
    %v1751 = vmul.f32 %v471, -0.5
    %v1752 = vmul.f32 %v472, -0.5
    %v1753 = vmul.f32 %v473, -0.5
    %v1754 = vmul.f32 %v474, -0.5
    %v1755 = vmul.f32 %v475, -0.5
    %v1756 = vmul.f32 %v476, -0.5
    %v1757 = vmul.f32 %v477, -0.5
    %v1758 = vmul.f32 %v478, -0.5
    %v1759 = vmul.f32 %v479, -0.5
    %v1760 = vmul.f32 %v480, -0.5
    %v1761 = vmul.f32 %v481, -0.5
    %v1762 = vmul.f32 %v482, -0.5
    %v1763 = vmul.f32 %v483, -0.5
    %v1764 = vmul.f32 %v484, -0.5
    %v1765 = vmul.f32 %v485, -0.5
    %v1766 = vmul.f32 %v486, -0.5
    %v1767 = vmul.f32 %v487, -0.5
    %v1768 = vmul.f32 %v488, -0.5
    %v1769 = vmul.f32 %v489, -0.5
    %v1770 = vmul.f32 %v490, -0.5
    %v1771 = vmul.f32 %v491, -0.5
    %v1772 = vmul.f32 %v492, -0.5
    %v1773 = vmul.f32 %v493, -0.5
    %v1774 = vmul.f32 %v494, -0.5
    %v1775 = vmul.f32 %v495, -0.5
    %v1776 = vmul.f32 %v496, -0.5
    %v1777 = vmul.f32 %v497, -0.5
    %v1778 = vmul.f32 %v498, -0.5
    %v1779 = vmul.f32 %v499, -0.5
    %v1780 = vmul.f32 %v500, -0.5
    %v1781 = vmul.f32 %v501, -0.5
    %v1782 = vmul.f32 %v502, -0.5
    %v1783 = vmul.f32 %v503, -0.5
    %v1784 = vmul.f32 %v504, -0.5
    %v1785 = vmul.f32 %v505, -0.5
    %v1786 = vmul.f32 %v506, -0.5
    %v1787 = vmul.f32 %v507, -0.5
    %v1788 = vmul.f32 %v508, -0.5
    %v1789 = vmul.f32 %v509, -0.5
    %v1790 = vmul.f32 %v510, -0.5
    %v1791 = vmul.f32 %v511, -0.5
    %v1792 = vmul.f32 %v512, -0.5
    %v1793 = vmul.f32 %v513, -0.5
    %v1794 = vmul.f32 %v514, -0.5
    %v1795 = vmul.f32 %v515, -0.5
    %v1796 = vmul.f32 %v516, -0.5
    %v1797 = vmul.f32 %v517, -0.5
    %v1798 = vmul.f32 %v518, -0.5
    %v1799 = vmul.f32 %v519, -0.5
    %v1800 = vmul.f32 %v520, -0.5
    %v1801 = vmul.f32 %v521, -0.5
    %v1802 = vmul.f32 %v522, -0.5
    %v1803 = vmul.f32 %v523, -0.5
    %v1804 = vmul.f32 %v524, -0.5
    %v1805 = vmul.f32 %v525, -0.5
    %v1806 = vmul.f32 %v526, -0.5
    %v1807 = vmul.f32 %v527, -0.5
    %v1808 = vmul.f32 %v528, -0.5
    %v1809 = vmul.f32 %v529, -0.5
    %v1810 = vmul.f32 %v530, -0.5
    %v1811 = vmul.f32 %v531, -0.5
    %v1812 = vadd.f32 %v1748, 0.75
    %v1813 = vadd.f32 %v1749, 0.75
    %v1814 = vadd.f32 %v1750, 0.75
    %v1815 = vadd.f32 %v1751, 0.75
    %v1816 = vadd.f32 %v1752, 0.75
    %v1817 = vadd.f32 %v1753, 0.75
    %v1818 = vadd.f32 %v1754, 0.75
    %v1819 = vadd.f32 %v1755, 0.75
    %v1820 = vadd.f32 %v1756, 0.75
    %v1821 = vadd.f32 %v1757, 0.75
    %v1822 = vadd.f32 %v1758, 0.75
    %v1823 = vadd.f32 %v1759, 0.75
    %v1824 = vadd.f32 %v1760, 0.75
    %v1825 = vadd.f32 %v1761, 0.75
    %v1826 = vadd.f32 %v1762, 0.75
    %v1827 = vadd.f32 %v1763, 0.75
    %v1828 = vadd.f32 %v1764, 0.75
    %v1829 = vadd.f32 %v1765, 0.75
    %v1830 = vadd.f32 %v1766, 0.75
    %v1831 = vadd.f32 %v1767, 0.75
    %v1832 = vadd.f32 %v1768, 0.75
    %v1833 = vadd.f32 %v1769, 0.75
    %v1834 = vadd.f32 %v1770, 0.75
    %v1835 = vadd.f32 %v1771, 0.75
    %v1836 = vadd.f32 %v1772, 0.75
    %v1837 = vadd.f32 %v1773, 0.75
    %v1838 = vadd.f32 %v1774, 0.75
    %v1839 = vadd.f32 %v1775, 0.75
    %v1840 = vadd.f32 %v1776, 0.75
    %v1841 = vadd.f32 %v1777, 0.75
    %v1842 = vadd.f32 %v1778, 0.75
    %v1843 = vadd.f32 %v1779, 0.75
    %v1844 = vadd.f32 %v1780, 0.75
    %v1845 = vadd.f32 %v1781, 0.75
    %v1846 = vadd.f32 %v1782, 0.75
    %v1847 = vadd.f32 %v1783, 0.75
    %v1848 = vadd.f32 %v1784, 0.75
    %v1849 = vadd.f32 %v1785, 0.75
    %v1850 = vadd.f32 %v1786, 0.75
    %v1851 = vadd.f32 %v1787, 0.75
    %v1852 = vadd.f32 %v1788, 0.75
    %v1853 = vadd.f32 %v1789, 0.75
    %v1854 = vadd.f32 %v1790, 0.75
    %v1855 = vadd.f32 %v1791, 0.75
    %v1856 = vadd.f32 %v1792, 0.75
    %v1857 = vadd.f32 %v1793, 0.75
    %v1858 = vadd.f32 %v1794, 0.75
    %v1859 = vadd.f32 %v1795, 0.75
    %v1860 = vadd.f32 %v1796, 0.75
    %v1861 = vadd.f32 %v1797, 0.75
    %v1862 = vadd.f32 %v1798, 0.75
    %v1863 = vadd.f32 %v1799, 0.75
    %v1864 = vadd.f32 %v1800, 0.75
    %v1865 = vadd.f32 %v1801, 0.75
    %v1866 = vadd.f32 %v1802, 0.75
    %v1867 = vadd.f32 %v1803, 0.75
    %v1868 = vadd.f32 %v1804, 0.75
    %v1869 = vadd.f32 %v1805, 0.75
    %v1870 = vadd.f32 %v1806, 0.75
    %v1871 = vadd.f32 %v1807, 0.75
    %v1872 = vadd.f32 %v1808, 0.75
    %v1873 = vadd.f32 %v1809, 0.75
    %v1874 = vadd.f32 %v1810, 0.75
    %v1875 = vadd.f32 %v1811, 0.75
    %v1876 = vmul.f32 %v1684, %v1812
    %v1877 = vmul.f32 %v1685, %v1813
    %v1878 = vmul.f32 %v1686, %v1814
    %v1879 = vmul.f32 %v1687, %v1815
    %v1880 = vmul.f32 %v1688, %v1816
    %v1881 = vmul.f32 %v1689, %v1817
    %v1882 = vmul.f32 %v1690, %v1818
    %v1883 = vmul.f32 %v1691, %v1819
    %v1884 = vmul.f32 %v1692, %v1820
    %v1885 = vmul.f32 %v1693, %v1821
    %v1886 = vmul.f32 %v1694, %v1822
    %v1887 = vmul.f32 %v1695, %v1823
    %v1888 = vmul.f32 %v1696, %v1824
    %v1889 = vmul.f32 %v1697, %v1825
    %v1890 = vmul.f32 %v1698, %v1826
    %v1891 = vmul.f32 %v1699, %v1827
    %v1892 = vmul.f32 %v1700, %v1828
    %v1893 = vmul.f32 %v1701, %v1829
    %v1894 = vmul.f32 %v1702, %v1830
    %v1895 = vmul.f32 %v1703, %v1831
    %v1896 = vmul.f32 %v1704, %v1832
    %v1897 = vmul.f32 %v1705, %v1833
    %v1898 = vmul.f32 %v1706, %v1834
    %v1899 = vmul.f32 %v1707, %v1835
    %v1900 = vmul.f32 %v1708, %v1836
    %v1901 = vmul.f32 %v1709, %v1837
    %v1902 = vmul.f32 %v1710, %v1838
    %v1903 = vmul.f32 %v1711, %v1839
    %v1904 = vmul.f32 %v1712, %v1840
    %v1905 = vmul.f32 %v1713, %v1841
    %v1906 = vmul.f32 %v1714, %v1842
    %v1907 = vmul.f32 %v1715, %v1843
    %v1908 = vmul.f32 %v1716, %v1844
    %v1909 = vmul.f32 %v1717, %v1845
    %v1910 = vmul.f32 %v1718, %v1846
    %v1911 = vmul.f32 %v1719, %v1847
    %v1912 = vmul.f32 %v1720, %v1848
    %v1913 = vmul.f32 %v1721, %v1849
    %v1914 = vmul.f32 %v1722, %v1850
    %v1915 = vmul.f32 %v1723, %v1851
    %v1916 = vmul.f32 %v1724, %v1852
    %v1917 = vmul.f32 %v1725, %v1853
    %v1918 = vmul.f32 %v1726, %v1854
    %v1919 = vmul.f32 %v1727, %v1855
    %v1920 = vmul.f32 %v1728, %v1856
    %v1921 = vmul.f32 %v1729, %v1857
    %v1922 = vmul.f32 %v1730, %v1858
    %v1923 = vmul.f32 %v1731, %v1859
    %v1924 = vmul.f32 %v1732, %v1860
    %v1925 = vmul.f32 %v1733, %v1861
    %v1926 = vmul.f32 %v1734, %v1862
    %v1927 = vmul.f32 %v1735, %v1863
    %v1928 = vmul.f32 %v1736, %v1864
    %v1929 = vmul.f32 %v1737, %v1865
    %v1930 = vmul.f32 %v1738, %v1866
    %v1931 = vmul.f32 %v1739, %v1867
    %v1932 = vmul.f32 %v1740, %v1868
    %v1933 = vmul.f32 %v1741, %v1869
    %v1934 = vmul.f32 %v1742, %v1870
    %v1935 = vmul.f32 %v1743, %v1871
    %v1936 = vmul.f32 %v1744, %v1872
    %v1937 = vmul.f32 %v1745, %v1873
    %v1938 = vmul.f32 %v1746, %v1874
    %v1939 = vmul.f32 %v1747, %v1875
    %v1940 = vmul.f32 %v1300, %v1300
    %v1941 = vmul.f32 %v1301, %v1301
    %v1942 = vmul.f32 %v1302, %v1302
    %v1943 = vmul.f32 %v1303, %v1303
    %v1944 = vmul.f32 %v1304, %v1304
    %v1945 = vmul.f32 %v1305, %v1305
    %v1946 = vmul.f32 %v1306, %v1306
    %v1947 = vmul.f32 %v1307, %v1307
    %v1948 = vmul.f32 %v1308, %v1308
    %v1949 = vmul.f32 %v1309, %v1309
    %v1950 = vmul.f32 %v1310, %v1310
    %v1951 = vmul.f32 %v1311, %v1311
    %v1952 = vmul.f32 %v1312, %v1312
    %v1953 = vmul.f32 %v1313, %v1313
    %v1954 = vmul.f32 %v1314, %v1314
    %v1955 = vmul.f32 %v1315, %v1315
    %v1956 = vmul.f32 %v1316, %v1316
    %v1957 = vmul.f32 %v1317, %v1317
    %v1958 = vmul.f32 %v1318, %v1318
    %v1959 = vmul.f32 %v1319, %v1319
    %v1960 = vmul.f32 %v1320, %v1320
    %v1961 = vmul.f32 %v1321, %v1321
    %v1962 = vmul.f32 %v1322, %v1322
    %v1963 = vmul.f32 %v1323, %v1323
    %v1964 = vmul.f32 %v1324, %v1324
    %v1965 = vmul.f32 %v1325, %v1325
    %v1966 = vmul.f32 %v1326, %v1326
    %v1967 = vmul.f32 %v1327, %v1327
    %v1968 = vmul.f32 %v1328, %v1328
    %v1969 = vmul.f32 %v1329, %v1329
    %v1970 = vmul.f32 %v1330, %v1330
    %v1971 = vmul.f32 %v1331, %v1331
    %v1972 = vmul.f32 %v1332, %v1332
    %v1973 = vmul.f32 %v1333, %v1333
    %v1974 = vmul.f32 %v1334, %v1334
    %v1975 = vmul.f32 %v1335, %v1335
    %v1976 = vmul.f32 %v1336, %v1336
    %v1977 = vmul.f32 %v1337, %v1337
    %v1978 = vmul.f32 %v1338, %v1338
    %v1979 = vmul.f32 %v1339, %v1339
    %v1980 = vmul.f32 %v1340, %v1340
    %v1981 = vmul.f32 %v1341, %v1341
    %v1982 = vmul.f32 %v1342, %v1342
    %v1983 = vmul.f32 %v1343, %v1343
    %v1984 = vmul.f32 %v1344, %v1344
    %v1985 = vmul.f32 %v1345, %v1345
    %v1986 = vmul.f32 %v1346, %v1346
    %v1987 = vmul.f32 %v1347, %v1347
    %v1988 = vmul.f32 %v1348, %v1348
    %v1989 = vmul.f32 %v1349, %v1349
    %v1990 = vmul.f32 %v1350, %v1350
    %v1991 = vmul.f32 %v1351, %v1351
    %v1992 = vmul.f32 %v1352, %v1352
    %v1993 = vmul.f32 %v1353, %v1353
    %v1994 = vmul.f32 %v1354, %v1354
    %v1995 = vmul.f32 %v1355, %v1355
    %v1996 = vmul.f32 %v1356, %v1356
    %v1997 = vmul.f32 %v1357, %v1357
    %v1998 = vmul.f32 %v1358, %v1358
    %v1999 = vmul.f32 %v1359, %v1359
    %v2000 = vmul.f32 %v1360, %v1360
    %v2001 = vmul.f32 %v1361, %v1361
    %v2002 = vmul.f32 %v1362, %v1362
    %v2003 = vmul.f32 %v1363, %v1363
    %v2004 = vmul.f32 %v1876, %v1940
    %v2005 = vmul.f32 %v1877, %v1941
    %v2006 = vmul.f32 %v1878, %v1942
    %v2007 = vmul.f32 %v1879, %v1943
    %v2008 = vmul.f32 %v1880, %v1944
    %v2009 = vmul.f32 %v1881, %v1945
    %v2010 = vmul.f32 %v1882, %v1946
    %v2011 = vmul.f32 %v1883, %v1947
    %v2012 = vmul.f32 %v1884, %v1948
    %v2013 = vmul.f32 %v1885, %v1949
    %v2014 = vmul.f32 %v1886, %v1950
    %v2015 = vmul.f32 %v1887, %v1951
    %v2016 = vmul.f32 %v1888, %v1952
    %v2017 = vmul.f32 %v1889, %v1953
    %v2018 = vmul.f32 %v1890, %v1954
    %v2019 = vmul.f32 %v1891, %v1955
    %v2020 = vmul.f32 %v1892, %v1956
    %v2021 = vmul.f32 %v1893, %v1957
    %v2022 = vmul.f32 %v1894, %v1958
    %v2023 = vmul.f32 %v1895, %v1959
    %v2024 = vmul.f32 %v1896, %v1960
    %v2025 = vmul.f32 %v1897, %v1961
    %v2026 = vmul.f32 %v1898, %v1962
    %v2027 = vmul.f32 %v1899, %v1963
    %v2028 = vmul.f32 %v1900, %v1964
    %v2029 = vmul.f32 %v1901, %v1965
    %v2030 = vmul.f32 %v1902, %v1966
    %v2031 = vmul.f32 %v1903, %v1967
    %v2032 = vmul.f32 %v1904, %v1968
    %v2033 = vmul.f32 %v1905, %v1969
    %v2034 = vmul.f32 %v1906, %v1970
    %v2035 = vmul.f32 %v1907, %v1971
    %v2036 = vmul.f32 %v1908, %v1972
    %v2037 = vmul.f32 %v1909, %v1973
    %v2038 = vmul.f32 %v1910, %v1974
    %v2039 = vmul.f32 %v1911, %v1975
    %v2040 = vmul.f32 %v1912, %v1976
    %v2041 = vmul.f32 %v1913, %v1977
    %v2042 = vmul.f32 %v1914, %v1978
    %v2043 = vmul.f32 %v1915, %v1979
    %v2044 = vmul.f32 %v1916, %v1980
    %v2045 = vmul.f32 %v1917, %v1981
    %v2046 = vmul.f32 %v1918, %v1982
    %v2047 = vmul.f32 %v1919, %v1983
    %v2048 = vmul.f32 %v1920, %v1984
    %v2049 = vmul.f32 %v1921, %v1985
    %v2050 = vmul.f32 %v1922, %v1986
    %v2051 = vmul.f32 %v1923, %v1987
    %v2052 = vmul.f32 %v1924, %v1988
    %v2053 = vmul.f32 %v1925, %v1989
    %v2054 = vmul.f32 %v1926, %v1990
    %v2055 = vmul.f32 %v1927, %v1991
    %v2056 = vmul.f32 %v1928, %v1992
    %v2057 = vmul.f32 %v1929, %v1993
    %v2058 = vmul.f32 %v1930, %v1994
    %v2059 = vmul.f32 %v1931, %v1995
    %v2060 = vmul.f32 %v1932, %v1996
    %v2061 = vmul.f32 %v1933, %v1997
    %v2062 = vmul.f32 %v1934, %v1998
    %v2063 = vmul.f32 %v1935, %v1999
    %v2064 = vmul.f32 %v1936, %v2000
    %v2065 = vmul.f32 %v1937, %v2001
    %v2066 = vmul.f32 %v1938, %v2002
    %v2067 = vmul.f32 %v1939, %v2003
    %v2068 = vld [vmem:[#allocation2] sm:$0x1]
    %vm2069 = vcmask 31744
    %v2070 = vsel %vm2069, %v2004, 0.0
    %v2071 = vsel %vm2069, %v2005, 0.0
    %v2072 = vadd.f32 %v2070, %v2071
    %v2073 = vsel %vm2069, %v2006, 0.0
    %v2074 = vadd.f32 %v2072, %v2073
    %v2075 = vsel %vm2069, %v2007, 0.0
    %v2076 = vadd.f32 %v2074, %v2075
    %v2077 = vsel %vm2069, %v2008, 0.0
    %v2078 = vadd.f32 %v2076, %v2077
    %v2079 = vsel %vm2069, %v2009, 0.0
    %v2080 = vadd.f32 %v2078, %v2079
    %v2081 = vsel %vm2069, %v2010, 0.0
    %v2082 = vadd.f32 %v2080, %v2081
    %v2083 = vsel %vm2069, %v2011, 0.0
    %v2084 = vadd.f32 %v2082, %v2083
    %v2085 = vsel %vm2069, %v2012, 0.0
    %v2086 = vadd.f32 %v2084, %v2085
    %v2087 = vsel %vm2069, %v2013, 0.0
    %v2088 = vadd.f32 %v2086, %v2087
    %v2089 = vsel %vm2069, %v2014, 0.0
    %v2090 = vadd.f32 %v2088, %v2089
    %v2091 = vsel %vm2069, %v2015, 0.0
    %v2092 = vadd.f32 %v2090, %v2091
    %v2093 = vsel %vm2069, %v2016, 0.0
    %v2094 = vadd.f32 %v2092, %v2093
    %v2095 = vsel %vm2069, %v2017, 0.0
    %v2096 = vadd.f32 %v2094, %v2095
    %v2097 = vsel %vm2069, %v2018, 0.0
    %v2098 = vadd.f32 %v2096, %v2097
    %v2099 = vsel %vm2069, %v2019, 0.0
    %v2100 = vadd.f32 %v2098, %v2099
    %v2101 = vsel %vm2069, %v2020, 0.0
    %v2102 = vadd.f32 %v2100, %v2101
    %v2103 = vsel %vm2069, %v2021, 0.0
    %v2104 = vadd.f32 %v2102, %v2103
    %v2105 = vsel %vm2069, %v2022, 0.0
    %v2106 = vadd.f32 %v2104, %v2105
    %v2107 = vsel %vm2069, %v2023, 0.0
    %v2108 = vadd.f32 %v2106, %v2107
    %v2109 = vsel %vm2069, %v2024, 0.0
    %v2110 = vadd.f32 %v2108, %v2109
    %v2111 = vsel %vm2069, %v2025, 0.0
    %v2112 = vadd.f32 %v2110, %v2111
    %v2113 = vsel %vm2069, %v2026, 0.0
    %v2114 = vadd.f32 %v2112, %v2113
    %v2115 = vsel %vm2069, %v2027, 0.0
    %v2116 = vadd.f32 %v2114, %v2115
    %v2117 = vsel %vm2069, %v2028, 0.0
    %v2118 = vadd.f32 %v2116, %v2117
    %v2119 = vsel %vm2069, %v2029, 0.0
    %v2120 = vadd.f32 %v2118, %v2119
    %v2121 = vsel %vm2069, %v2030, 0.0
    %v2122 = vadd.f32 %v2120, %v2121
    %v2123 = vsel %vm2069, %v2031, 0.0
    %v2124 = vadd.f32 %v2122, %v2123
    %v2125 = vsel %vm2069, %v2032, 0.0
    %v2126 = vadd.f32 %v2124, %v2125
    %v2127 = vsel %vm2069, %v2033, 0.0
    %v2128 = vadd.f32 %v2126, %v2127
    %v2129 = vsel %vm2069, %v2034, 0.0
    %v2130 = vadd.f32 %v2128, %v2129
    %v2131 = vsel %vm2069, %v2035, 0.0
    %v2132 = vadd.f32 %v2130, %v2131
    %v2133 = vsel %vm2069, %v2036, 0.0
    %v2134 = vadd.f32 %v2132, %v2133
    %v2135 = vsel %vm2069, %v2037, 0.0
    %v2136 = vadd.f32 %v2134, %v2135
    %v2137 = vsel %vm2069, %v2038, 0.0
    %v2138 = vadd.f32 %v2136, %v2137
    %v2139 = vsel %vm2069, %v2039, 0.0
    %v2140 = vadd.f32 %v2138, %v2139
    %v2141 = vsel %vm2069, %v2040, 0.0
    %v2142 = vadd.f32 %v2140, %v2141
    %v2143 = vsel %vm2069, %v2041, 0.0
    %v2144 = vadd.f32 %v2142, %v2143
    %v2145 = vsel %vm2069, %v2042, 0.0
    %v2146 = vadd.f32 %v2144, %v2145
    %v2147 = vsel %vm2069, %v2043, 0.0
    %v2148 = vadd.f32 %v2146, %v2147
    %v2149 = vsel %vm2069, %v2044, 0.0
    %v2150 = vadd.f32 %v2148, %v2149
    %v2151 = vsel %vm2069, %v2045, 0.0
    %v2152 = vadd.f32 %v2150, %v2151
    %v2153 = vsel %vm2069, %v2046, 0.0
    %v2154 = vadd.f32 %v2152, %v2153
    %v2155 = vsel %vm2069, %v2047, 0.0
    %v2156 = vadd.f32 %v2154, %v2155
    %v2157 = vsel %vm2069, %v2048, 0.0
    %v2158 = vadd.f32 %v2156, %v2157
    %v2159 = vsel %vm2069, %v2049, 0.0
    %v2160 = vadd.f32 %v2158, %v2159
    %v2161 = vsel %vm2069, %v2050, 0.0
    %v2162 = vadd.f32 %v2160, %v2161
    %v2163 = vsel %vm2069, %v2051, 0.0
    %v2164 = vadd.f32 %v2162, %v2163
    %v2165 = vsel %vm2069, %v2052, 0.0
    %v2166 = vadd.f32 %v2164, %v2165
    %v2167 = vsel %vm2069, %v2053, 0.0
    %v2168 = vadd.f32 %v2166, %v2167
    %v2169 = vsel %vm2069, %v2054, 0.0
    %v2170 = vadd.f32 %v2168, %v2169
    %v2171 = vsel %vm2069, %v2055, 0.0
    %v2172 = vadd.f32 %v2170, %v2171
    %v2173 = vsel %vm2069, %v2056, 0.0
    %v2174 = vadd.f32 %v2172, %v2173
    %v2175 = vsel %vm2069, %v2057, 0.0
    %v2176 = vadd.f32 %v2174, %v2175
    %v2177 = vsel %vm2069, %v2058, 0.0
    %v2178 = vadd.f32 %v2176, %v2177
    %v2179 = vsel %vm2069, %v2059, 0.0
    %v2180 = vadd.f32 %v2178, %v2179
    %v2181 = vsel %vm2069, %v2060, 0.0
    %v2182 = vadd.f32 %v2180, %v2181
    %v2183 = vsel %vm2069, %v2061, 0.0
    %v2184 = vadd.f32 %v2182, %v2183
    %v2185 = vsel %vm2069, %v2062, 0.0
    %v2186 = vadd.f32 %v2184, %v2185
    %v2187 = vsel %vm2069, %v2063, 0.0
    %v2188 = vadd.f32 %v2186, %v2187
    %v2189 = vsel %vm2069, %v2064, 0.0
    %v2190 = vadd.f32 %v2188, %v2189
    %v2191 = vsel %vm2069, %v2065, 0.0
    %v2192 = vadd.f32 %v2190, %v2191
    %v2193 = vsel %vm2069, %v2066, 0.0
    %v2194 = vadd.f32 %v2192, %v2193
    %v2195 = vsel %vm2069, %v2067, 0.0
    %v2196 = vadd.f32 %v2194, %v2195
    %v2197 = vrot.slane %v2196, 4
    %v2198 = vadd.f32 %v2196, %v2197
    %v2199 = vrot.slane %v2198, 2
    %v2200 = vadd.f32 %v2198, %v2199
    %v2201 = vrot.slane %v2200, 1
    %v2202 = vadd.f32 %v2200, %v2201
    %v2203 = vadd.f32 %v2068, %v2202
    %vm2204 = vcmask 24576
    %2205 = vst.msk [vmem:[#allocation2] sm:$0x1] %vm2204, %v2203
    // Predicated region
    $region14: #{tpu_custom_call.1} parent=1 // pred_check
      %p2206 = pneg %p12
    $region15: #{tpu_custom_call.1} parent=1 // pred_check_branch
      %2208 = sbr.rel (%p2206) target = $region17
    $region16: #{tpu_custom_call.1} parent=1 // pred_region
      %v2209 = vld [vmem:[#allocation2] sm:$0x1]
      %v2210 = vsel %vm2204, %v2209, 0.0
      %2211 = vadd.xlane.f32.xlu0 %v2210
      %v2212 = vpop.xlane.xlu0 %2211
      %vm2213 = vcmask 0
      %2214 = vst.msk [vmem:[#allocation3] sm:$0x1] %vm2213, %v2212
    $region17: #{tpu_custom_call.1} parent=1 // pred_fallthru
      _
    // Predicated region
    $region18: #{tpu_custom_call.1} parent=1 // pred_check
      _
    $region19: #{tpu_custom_call.1} parent=1 // pred_check_branch
      %2216 = sbr.rel (0) target = $region21
    $region20: #{tpu_custom_call.1} parent=1 // pred_region
      %s2218 = ssub.s32 16, 16
      %2219 = vsyncadd [#allocation4], %s2218
      %s2221 = sshll.u32 [#allocation3], 4
      %s2222 = int_to_ptr.vmem [resolvable:$true] %s2221
      %2224 = dma.vmem_to_hbm [thread:$0]  %s2222, 16, %s2, [#allocation4]
    $region21: #{tpu_custom_call.1} parent=1 // pred_fallthru
      _
    // Predicated region
    $region22: #{tpu_custom_call.1} parent=1 // pred_check
      _
    $region23: #{tpu_custom_call.1} parent=1 // pred_check_branch
      %2226 = sbr.rel (0) target = $region25
    $region24: #{tpu_custom_call.1} parent=1 // pred_region
      %2227 = dma.done [#allocation4], 16
    $region25: #{tpu_custom_call.1} parent=1 // pred_fallthru
      _
    %2228 = vsyncpa [#allocation4], 1

</llo_original>
